<compile_context>
chip_gen: v7x
topology: tpu7x:2x2x1
jax: 0.10.0
libtpu: 0.0.40
codegen_flags: <defaults>
</compile_context>

<pallas_src>
import functools
from math import sqrt

import jax
import jax.numpy as jnp
from jax import lax
from jax.experimental import pallas as pl
from jax.experimental.pallas import tpu as pltpu


def _bm_attn_kernel(qw_ref, qm_ref, kw_ref, vw_ref, km_ref, vm_ref,
                    o_ww_ref, o_mm_ref, o_wm_ref, o_mw_ref, *,
                    scale, num_heads, e_dim, d_dim, l_w):
    """One batch element per grid step; all heads, both query streams,
    both K/V groups.

    qw_ref: (1, Lw, H*E)   qm_ref: (1, Lm, H*E)
    kw_ref: (1, Sw, H*E)   vw_ref: (1, Sw, H*D)
    km_ref: (1, Sm, H*E)   vm_ref: (1, Sm, H*D)
    o_*_ref: (1, L*, H*D)
    """
    # Merge the two query streams once (sublane concat; Lw multiple of 8).
    q_cat = jnp.concatenate([qw_ref[0], qm_ref[0]], axis=0)   # (Lw+Lm, H*E)

    # KV group (k_w, v_w): rows 0:Lw -> ctx_ww, rows Lw: -> ctx_mw
    # KV group (k_m, v_m): rows 0:Lw -> ctx_wm, rows Lw: -> ctx_mm
    for k_ref, v_ref, o_top_ref, o_bot_ref in (
            (kw_ref, vw_ref, o_ww_ref, o_mw_ref),
            (km_ref, vm_ref, o_wm_ref, o_mm_ref)):
        k = k_ref[0]                                           # (S, H*E)
        v = v_ref[0]                                           # (S, H*D)
        for h in range(num_heads):
            qh = q_cat[:, h * e_dim:(h + 1) * e_dim]           # (Lw+Lm, E)
            kh = k[:, h * e_dim:(h + 1) * e_dim]               # (S, E)
            vh = v[:, h * d_dim:(h + 1) * d_dim]               # (S, D)
            # scores = q @ k^T without materializing k.T (contract on E)
            s = lax.dot_general(
                qh, kh,
                dimension_numbers=(((1,), (1,)), ((), ())),
                preferred_element_type=jnp.float32) * scale    # (Lw+Lm, S) f32
            # numerically stable softmax in f32 (exact divide)
            m = jnp.max(s, axis=-1, keepdims=True)
            p = jnp.exp(s - m)
            a = (p / jnp.sum(p, axis=-1, keepdims=True)).astype(v.dtype)
            # context = A @ V  (f32 accumulate on the MXU)
            ctx = lax.dot_general(
                a, vh,
                dimension_numbers=(((1,), (0,)), ((), ())),
                preferred_element_type=jnp.float32)            # (Lw+Lm, D)
            # Direct sliced stores: top rows belong to q_w, bottom to q_m.
            o_top_ref[0, :, h * d_dim:(h + 1) * d_dim] = (
                ctx[:l_w].astype(o_top_ref.dtype))
            o_bot_ref[0, :, h * d_dim:(h + 1) * d_dim] = (
                ctx[l_w:].astype(o_bot_ref.dtype))


def bm_attention_forward(queries_w, keys_w, values_w,
                         queries_m, keys_m, values_m,
                         attn_mask=None, scale=None):
    """Mirrors BMAttention.forward (eval mode). Returns (contexts, attns)."""
    del attn_mask  # accepted but unused by the reference forward path
    B, Lw, H, E = queries_w.shape
    _, Lm, _, _ = queries_m.shape
    _, Sw, _, D = values_w.shape
    _, Sm, _, _ = values_m.shape
    sc = float(scale) if scale is not None else 1.0 / sqrt(E)

    # Contiguous (metadata-only) reshapes: no HBM transpose/copy passes.
    qw = queries_w.reshape(B, Lw, H * E)
    qm = queries_m.reshape(B, Lm, H * E)
    kw = keys_w.reshape(B, Sw, H * E)
    vw = values_w.reshape(B, Sw, H * D)
    km = keys_m.reshape(B, Sm, H * E)
    vm = values_m.reshape(B, Sm, H * D)

    kernel = functools.partial(_bm_attn_kernel, scale=sc, num_heads=H,
                               e_dim=E, d_dim=D, l_w=Lw)

    ctx_ww, ctx_mm, ctx_wm, ctx_mw = pl.pallas_call(
        kernel,
        out_shape=(jax.ShapeDtypeStruct((B, Lw, H * D), queries_w.dtype),
                   jax.ShapeDtypeStruct((B, Lm, H * D), queries_m.dtype),
                   jax.ShapeDtypeStruct((B, Lw, H * D), queries_w.dtype),
                   jax.ShapeDtypeStruct((B, Lm, H * D), queries_m.dtype)),
        grid_spec=pltpu.PrefetchScalarGridSpec(
            num_scalar_prefetch=0,
            grid=(B,),
            in_specs=[
                pl.BlockSpec((1, Lw, H * E), lambda b: (b, 0, 0)),
                pl.BlockSpec((1, Lm, H * E), lambda b: (b, 0, 0)),
                pl.BlockSpec((1, Sw, H * E), lambda b: (b, 0, 0)),
                pl.BlockSpec((1, Sw, H * D), lambda b: (b, 0, 0)),
                pl.BlockSpec((1, Sm, H * E), lambda b: (b, 0, 0)),
                pl.BlockSpec((1, Sm, H * D), lambda b: (b, 0, 0)),
            ],
            out_specs=[
                pl.BlockSpec((1, Lw, H * D), lambda b: (b, 0, 0)),
                pl.BlockSpec((1, Lm, H * D), lambda b: (b, 0, 0)),
                pl.BlockSpec((1, Lw, H * D), lambda b: (b, 0, 0)),
                pl.BlockSpec((1, Lm, H * D), lambda b: (b, 0, 0)),
            ],
        ),
        compiler_params=pltpu.CompilerParams(
            dimension_semantics=("parallel",),   # batch axis -> both TCs on v7x
        ),
    )(qw, qm, kw, vw, km, vm)

    # PyTorch forward order: (qw,kw,vw), (qm,km,vm), (qw,km,vm), (qm,kw,vw)
    contexts = [ctx_ww, ctx_mm, ctx_wm, ctx_mw]
    attns = [None, None, None, None]             # output_attention=False
    return contexts, attns


def _reference_attention(q, k, v, scale=None):
    B, L, H, E = q.shape
    _, S, _, D = v.shape
    sc = scale if scale is not None else 1.0 / sqrt(E)
    scores = jnp.einsum('blhe,bshe->bhls', q.astype(jnp.float32),
                        k.astype(jnp.float32))
    a = jax.nn.softmax(sc * scores, axis=-1)
    out = jnp.einsum('bhls,bshd->blhd', a, v.astype(jnp.float32))
    return out.reshape(B, L, H * D)


if __name__ == "__main__":
    key = jax.random.PRNGKey(0)
    B, H, E, D = 2, 2, 16, 16
    Lw, Lm = 8, 16   # window / main sequence lengths (may differ)

    k0, k1, k2, k3, k4, k5 = jax.random.split(key, 6)
    queries_w = jax.random.normal(k0, (B, Lw, H, E), dtype=jnp.float32)
    keys_w    = jax.random.normal(k1, (B, Lw, H, E), dtype=jnp.float32)
    values_w  = jax.random.normal(k2, (B, Lw, H, D), dtype=jnp.float32)
    queries_m = jax.random.normal(k3, (B, Lm, H, E), dtype=jnp.float32)
    keys_m    = jax.random.normal(k4, (B, Lm, H, E), dtype=jnp.float32)
    values_m  = jax.random.normal(k5, (B, Lm, H, D), dtype=jnp.float32)

    contexts, attns = bm_attention_forward(queries_w, keys_w, values_w,
                                           queries_m, keys_m, values_m,
                                           attn_mask=None)
    contexts = [jax.block_until_ready(c) for c in contexts]

    # correctness check against pure-JAX reference (exact softmax in kernel)
    refs = [
        _reference_attention(queries_w, keys_w, values_w),
        _reference_attention(queries_m, keys_m, values_m),
        _reference_attention(queries_w, keys_m, values_m),
        _reference_attention(queries_m, keys_w, values_w),
    ]
    for c, r in zip(contexts, refs):
        assert c.shape == r.shape, (c.shape, r.shape)
        err = float(jnp.max(jnp.abs(c - r)))
        assert err < 1e-3, err
    assert all(a is None for a in attns)

    print("KERNEL_OK")
</pallas_src>

<mosaic_0001>
module attributes {stable_mosaic.version = 11 : i64} {
  func.func @_bm_attn_kernel(%arg0: i32, %arg1: memref<1x8x32xf32, #tpu.memory_space<vmem>>, %arg2: memref<1x16x32xf32, #tpu.memory_space<vmem>>, %arg3: memref<1x8x32xf32, #tpu.memory_space<vmem>>, %arg4: memref<1x8x32xf32, #tpu.memory_space<vmem>>, %arg5: memref<1x16x32xf32, #tpu.memory_space<vmem>>, %arg6: memref<1x16x32xf32, #tpu.memory_space<vmem>>, %arg7: memref<1x8x32xf32, #tpu.memory_space<vmem>>, %arg8: memref<1x16x32xf32, #tpu.memory_space<vmem>>, %arg9: memref<1x8x32xf32, #tpu.memory_space<vmem>>, %arg10: memref<1x16x32xf32, #tpu.memory_space<vmem>>) attributes {dimension_semantics = [#tpu.dimension_semantics<parallel>], iteration_bounds = array<i64: 2>, scalar_prefetch = 0 : i64, scratch_operands = 0 : i64, tpu.core_type = #tpu.core_type<tc>, window_params = [{transform_indices = @transform_0, window_bounds = array<i64: 1, 8, 32>}, {transform_indices = @transform_1, window_bounds = array<i64: 1, 16, 32>}, {transform_indices = @transform_2, window_bounds = array<i64: 1, 8, 32>}, {transform_indices = @transform_3, window_bounds = array<i64: 1, 8, 32>}, {transform_indices = @transform_4, window_bounds = array<i64: 1, 16, 32>}, {transform_indices = @transform_5, window_bounds = array<i64: 1, 16, 32>}, {transform_indices = @transform_6, window_bounds = array<i64: 1, 8, 32>}, {transform_indices = @transform_7, window_bounds = array<i64: 1, 16, 32>}, {transform_indices = @transform_8, window_bounds = array<i64: 1, 8, 32>}, {transform_indices = @transform_9, window_bounds = array<i64: 1, 16, 32>}]} {
    %c0 = arith.constant 0 : index
    %c0_0 = arith.constant 0 : index
    %c0_1 = arith.constant 0 : index
    %0 = vector.load %arg1[%c0, %c0_0, %c0_1] : memref<1x8x32xf32, #tpu.memory_space<vmem>>, vector<1x8x32xf32>
    %1 = vector.shape_cast %0 : vector<1x8x32xf32> to vector<8x32xf32>
    %c0_2 = arith.constant 0 : index
    %c0_3 = arith.constant 0 : index
    %c0_4 = arith.constant 0 : index
    %2 = vector.load %arg2[%c0_2, %c0_3, %c0_4] : memref<1x16x32xf32, #tpu.memory_space<vmem>>, vector<1x16x32xf32>
    %3 = vector.shape_cast %2 : vector<1x16x32xf32> to vector<16x32xf32>
    %4 = tpu.concatenate %1, %3 in 0 : vector<8x32xf32>, vector<16x32xf32> -> vector<24x32xf32>
    %c0_5 = arith.constant 0 : index
    %c0_6 = arith.constant 0 : index
    %c0_7 = arith.constant 0 : index
    %5 = vector.load %arg3[%c0_5, %c0_6, %c0_7] : memref<1x8x32xf32, #tpu.memory_space<vmem>>, vector<1x8x32xf32>
    %6 = vector.shape_cast %5 : vector<1x8x32xf32> to vector<8x32xf32>
    %c0_8 = arith.constant 0 : index
    %c0_9 = arith.constant 0 : index
    %c0_10 = arith.constant 0 : index
    %7 = vector.load %arg4[%c0_8, %c0_9, %c0_10] : memref<1x8x32xf32, #tpu.memory_space<vmem>>, vector<1x8x32xf32>
    %8 = vector.shape_cast %7 : vector<1x8x32xf32> to vector<8x32xf32>
    %9 = vector.extract_strided_slice %4 {offsets = [0, 0], sizes = [24, 16], strides = [1, 1]} : vector<24x32xf32> to vector<24x16xf32>
    %10 = vector.extract_strided_slice %6 {offsets = [0, 0], sizes = [8, 16], strides = [1, 1]} : vector<8x32xf32> to vector<8x16xf32>
    %11 = vector.extract_strided_slice %8 {offsets = [0, 0], sizes = [8, 16], strides = [1, 1]} : vector<8x32xf32> to vector<8x16xf32>
    %cst = arith.constant dense<0.000000e+00> : vector<24x8xf32>
    %12 = tpu.matmul %9, %10, %cst {dimension_numbers = #tpu.dot_dimension_numbers<[1], [1], [0], [0], [0, 0, 1, 0], [], []>} : vector<24x16xf32>, vector<8x16xf32>, vector<24x8xf32> -> vector<24x8xf32>
    %cst_11 = arith.constant 2.500000e-01 : f32
    %13 = vector.broadcast %cst_11 : f32 to vector<24x8xf32>
    %14 = arith.mulf %12, %13 : vector<24x8xf32>
    %cst_12 = arith.constant dense<0xFF800000> : vector<24xf32>
    %15 = vector.multi_reduction <maximumf>, %14, %cst_12 [1] : vector<24x8xf32> to vector<24xf32>
    %16 = vector.shape_cast %15 : vector<24xf32> to vector<24x1xf32>
    %17 = vector.broadcast %16 : vector<24x1xf32> to vector<24x8xf32>
    %18 = arith.subf %14, %17 : vector<24x8xf32>
    %19 = math.exp %18 : vector<24x8xf32>
    %cst_13 = arith.constant dense<0.000000e+00> : vector<24xf32>
    %20 = vector.multi_reduction <add>, %19, %cst_13 [1] : vector<24x8xf32> to vector<24xf32>
    %21 = vector.shape_cast %20 : vector<24xf32> to vector<24x1xf32>
    %22 = vector.broadcast %21 : vector<24x1xf32> to vector<24x8xf32>
    %23 = arith.divf %19, %22 : vector<24x8xf32>
    %cst_14 = arith.constant dense<0.000000e+00> : vector<24x16xf32>
    %24 = tpu.matmul %23, %11, %cst_14 {dimension_numbers = #tpu.dot_dimension_numbers<[1], [0], [0], [1], [0, 0, 1, 1], [], []>} : vector<24x8xf32>, vector<8x16xf32>, vector<24x16xf32> -> vector<24x16xf32>
    %25 = vector.extract_strided_slice %24 {offsets = [0, 0], sizes = [8, 16], strides = [1, 1]} : vector<24x16xf32> to vector<8x16xf32>
    %c0_15 = arith.constant 0 : index
    %c0_16 = arith.constant 0 : index
    %c0_17 = arith.constant 0 : index
    %26 = vector.load %arg7[%c0_15, %c0_16, %c0_17] : memref<1x8x32xf32, #tpu.memory_space<vmem>>, vector<1x8x16xf32>
    %27 = vector.shape_cast %26 : vector<1x8x16xf32> to vector<8x16xf32>
    %28 = vector.shape_cast %25 : vector<8x16xf32> to vector<1x8x16xf32>
    tpu.vector_store %arg7[%c0_15, %c0_16, %c0_17], %28 {strides = array<i32>} : memref<1x8x32xf32, #tpu.memory_space<vmem>>, vector<1x8x16xf32>,
    %29 = vector.extract_strided_slice %24 {offsets = [8, 0], sizes = [16, 16], strides = [1, 1]} : vector<24x16xf32> to vector<16x16xf32>
    %c0_18 = arith.constant 0 : index
    %c0_19 = arith.constant 0 : index
    %c0_20 = arith.constant 0 : index
    %30 = vector.load %arg10[%c0_18, %c0_19, %c0_20] : memref<1x16x32xf32, #tpu.memory_space<vmem>>, vector<1x16x16xf32>
    %31 = vector.shape_cast %30 : vector<1x16x16xf32> to vector<16x16xf32>
    %32 = vector.shape_cast %29 : vector<16x16xf32> to vector<1x16x16xf32>
    tpu.vector_store %arg10[%c0_18, %c0_19, %c0_20], %32 {strides = array<i32>} : memref<1x16x32xf32, #tpu.memory_space<vmem>>, vector<1x16x16xf32>,
    %33 = vector.extract_strided_slice %4 {offsets = [0, 16], sizes = [24, 16], strides = [1, 1]} : vector<24x32xf32> to vector<24x16xf32>
    %34 = vector.extract_strided_slice %6 {offsets = [0, 16], sizes = [8, 16], strides = [1, 1]} : vector<8x32xf32> to vector<8x16xf32>
    %35 = vector.extract_strided_slice %8 {offsets = [0, 16], sizes = [8, 16], strides = [1, 1]} : vector<8x32xf32> to vector<8x16xf32>
    %cst_21 = arith.constant dense<0.000000e+00> : vector<24x8xf32>
    %36 = tpu.matmul %33, %34, %cst_21 {dimension_numbers = #tpu.dot_dimension_numbers<[1], [1], [0], [0], [0, 0, 1, 0], [], []>} : vector<24x16xf32>, vector<8x16xf32>, vector<24x8xf32> -> vector<24x8xf32>
    %cst_22 = arith.constant 2.500000e-01 : f32
    %37 = vector.broadcast %cst_22 : f32 to vector<24x8xf32>
    %38 = arith.mulf %36, %37 : vector<24x8xf32>
    %cst_23 = arith.constant dense<0xFF800000> : vector<24xf32>
    %39 = vector.multi_reduction <maximumf>, %38, %cst_23 [1] : vector<24x8xf32> to vector<24xf32>
    %40 = vector.shape_cast %39 : vector<24xf32> to vector<24x1xf32>
    %41 = vector.broadcast %40 : vector<24x1xf32> to vector<24x8xf32>
    %42 = arith.subf %38, %41 : vector<24x8xf32>
    %43 = math.exp %42 : vector<24x8xf32>
    %cst_24 = arith.constant dense<0.000000e+00> : vector<24xf32>
    %44 = vector.multi_reduction <add>, %43, %cst_24 [1] : vector<24x8xf32> to vector<24xf32>
    %45 = vector.shape_cast %44 : vector<24xf32> to vector<24x1xf32>
    %46 = vector.broadcast %45 : vector<24x1xf32> to vector<24x8xf32>
    %47 = arith.divf %43, %46 : vector<24x8xf32>
    %cst_25 = arith.constant dense<0.000000e+00> : vector<24x16xf32>
    %48 = tpu.matmul %47, %35, %cst_25 {dimension_numbers = #tpu.dot_dimension_numbers<[1], [0], [0], [1], [0, 0, 1, 1], [], []>} : vector<24x8xf32>, vector<8x16xf32>, vector<24x16xf32> -> vector<24x16xf32>
    %49 = vector.extract_strided_slice %48 {offsets = [0, 0], sizes = [8, 16], strides = [1, 1]} : vector<24x16xf32> to vector<8x16xf32>
    %c0_26 = arith.constant 0 : index
    %c0_27 = arith.constant 0 : index
    %c16 = arith.constant 16 : index
    %50 = vector.load %arg7[%c0_26, %c0_27, %c16] : memref<1x8x32xf32, #tpu.memory_space<vmem>>, vector<1x8x16xf32>
    %51 = vector.shape_cast %50 : vector<1x8x16xf32> to vector<8x16xf32>
    %52 = vector.shape_cast %49 : vector<8x16xf32> to vector<1x8x16xf32>
    tpu.vector_store %arg7[%c0_26, %c0_27, %c16], %52 {strides = array<i32>} : memref<1x8x32xf32, #tpu.memory_space<vmem>>, vector<1x8x16xf32>,
    %53 = vector.extract_strided_slice %48 {offsets = [8, 0], sizes = [16, 16], strides = [1, 1]} : vector<24x16xf32> to vector<16x16xf32>
    %c0_28 = arith.constant 0 : index
    %c0_29 = arith.constant 0 : index
    %c16_30 = arith.constant 16 : index
    %54 = vector.load %arg10[%c0_28, %c0_29, %c16_30] : memref<1x16x32xf32, #tpu.memory_space<vmem>>, vector<1x16x16xf32>
    %55 = vector.shape_cast %54 : vector<1x16x16xf32> to vector<16x16xf32>
    %56 = vector.shape_cast %53 : vector<16x16xf32> to vector<1x16x16xf32>
    tpu.vector_store %arg10[%c0_28, %c0_29, %c16_30], %56 {strides = array<i32>} : memref<1x16x32xf32, #tpu.memory_space<vmem>>, vector<1x16x16xf32>,
    %c0_31 = arith.constant 0 : index
    %c0_32 = arith.constant 0 : index
    %c0_33 = arith.constant 0 : index
    %57 = vector.load %arg5[%c0_31, %c0_32, %c0_33] : memref<1x16x32xf32, #tpu.memory_space<vmem>>, vector<1x16x32xf32>
    %58 = vector.shape_cast %57 : vector<1x16x32xf32> to vector<16x32xf32>
    %c0_34 = arith.constant 0 : index
    %c0_35 = arith.constant 0 : index
    %c0_36 = arith.constant 0 : index
    %59 = vector.load %arg6[%c0_34, %c0_35, %c0_36] : memref<1x16x32xf32, #tpu.memory_space<vmem>>, vector<1x16x32xf32>
    %60 = vector.shape_cast %59 : vector<1x16x32xf32> to vector<16x32xf32>
    %61 = vector.extract_strided_slice %4 {offsets = [0, 0], sizes = [24, 16], strides = [1, 1]} : vector<24x32xf32> to vector<24x16xf32>
    %62 = vector.extract_strided_slice %58 {offsets = [0, 0], sizes = [16, 16], strides = [1, 1]} : vector<16x32xf32> to vector<16x16xf32>
    %63 = vector.extract_strided_slice %60 {offsets = [0, 0], sizes = [16, 16], strides = [1, 1]} : vector<16x32xf32> to vector<16x16xf32>
    %cst_37 = arith.constant dense<0.000000e+00> : vector<24x16xf32>
    %64 = tpu.matmul %61, %62, %cst_37 {dimension_numbers = #tpu.dot_dimension_numbers<[1], [1], [0], [0], [0, 0, 1, 0], [], []>} : vector<24x16xf32>, vector<16x16xf32>, vector<24x16xf32> -> vector<24x16xf32>
    %cst_38 = arith.constant 2.500000e-01 : f32
    %65 = vector.broadcast %cst_38 : f32 to vector<24x16xf32>
    %66 = arith.mulf %64, %65 : vector<24x16xf32>
    %cst_39 = arith.constant dense<0xFF800000> : vector<24xf32>
    %67 = vector.multi_reduction <maximumf>, %66, %cst_39 [1] : vector<24x16xf32> to vector<24xf32>
    %68 = vector.shape_cast %67 : vector<24xf32> to vector<24x1xf32>
    %69 = vector.broadcast %68 : vector<24x1xf32> to vector<24x16xf32>
    %70 = arith.subf %66, %69 : vector<24x16xf32>
    %71 = math.exp %70 : vector<24x16xf32>
    %cst_40 = arith.constant dense<0.000000e+00> : vector<24xf32>
    %72 = vector.multi_reduction <add>, %71, %cst_40 [1] : vector<24x16xf32> to vector<24xf32>
    %73 = vector.shape_cast %72 : vector<24xf32> to vector<24x1xf32>
    %74 = vector.broadcast %73 : vector<24x1xf32> to vector<24x16xf32>
    %75 = arith.divf %71, %74 : vector<24x16xf32>
    %cst_41 = arith.constant dense<0.000000e+00> : vector<24x16xf32>
    %76 = tpu.matmul %75, %63, %cst_41 {dimension_numbers = #tpu.dot_dimension_numbers<[1], [0], [0], [1], [0, 0, 1, 1], [], []>} : vector<24x16xf32>, vector<16x16xf32>, vector<24x16xf32> -> vector<24x16xf32>
    %77 = vector.extract_strided_slice %76 {offsets = [0, 0], sizes = [8, 16], strides = [1, 1]} : vector<24x16xf32> to vector<8x16xf32>
    %c0_42 = arith.constant 0 : index
    %c0_43 = arith.constant 0 : index
    %c0_44 = arith.constant 0 : index
    %78 = vector.load %arg9[%c0_42, %c0_43, %c0_44] : memref<1x8x32xf32, #tpu.memory_space<vmem>>, vector<1x8x16xf32>
    %79 = vector.shape_cast %78 : vector<1x8x16xf32> to vector<8x16xf32>
    %80 = vector.shape_cast %77 : vector<8x16xf32> to vector<1x8x16xf32>
    tpu.vector_store %arg9[%c0_42, %c0_43, %c0_44], %80 {strides = array<i32>} : memref<1x8x32xf32, #tpu.memory_space<vmem>>, vector<1x8x16xf32>,
    %81 = vector.extract_strided_slice %76 {offsets = [8, 0], sizes = [16, 16], strides = [1, 1]} : vector<24x16xf32> to vector<16x16xf32>
    %c0_45 = arith.constant 0 : index
    %c0_46 = arith.constant 0 : index
    %c0_47 = arith.constant 0 : index
    %82 = vector.load %arg8[%c0_45, %c0_46, %c0_47] : memref<1x16x32xf32, #tpu.memory_space<vmem>>, vector<1x16x16xf32>
    %83 = vector.shape_cast %82 : vector<1x16x16xf32> to vector<16x16xf32>
    %84 = vector.shape_cast %81 : vector<16x16xf32> to vector<1x16x16xf32>
    tpu.vector_store %arg8[%c0_45, %c0_46, %c0_47], %84 {strides = array<i32>} : memref<1x16x32xf32, #tpu.memory_space<vmem>>, vector<1x16x16xf32>,
    %85 = vector.extract_strided_slice %4 {offsets = [0, 16], sizes = [24, 16], strides = [1, 1]} : vector<24x32xf32> to vector<24x16xf32>
    %86 = vector.extract_strided_slice %58 {offsets = [0, 16], sizes = [16, 16], strides = [1, 1]} : vector<16x32xf32> to vector<16x16xf32>
    %87 = vector.extract_strided_slice %60 {offsets = [0, 16], sizes = [16, 16], strides = [1, 1]} : vector<16x32xf32> to vector<16x16xf32>
    %cst_48 = arith.constant dense<0.000000e+00> : vector<24x16xf32>
    %88 = tpu.matmul %85, %86, %cst_48 {dimension_numbers = #tpu.dot_dimension_numbers<[1], [1], [0], [0], [0, 0, 1, 0], [], []>} : vector<24x16xf32>, vector<16x16xf32>, vector<24x16xf32> -> vector<24x16xf32>
    %cst_49 = arith.constant 2.500000e-01 : f32
    %89 = vector.broadcast %cst_49 : f32 to vector<24x16xf32>
    %90 = arith.mulf %88, %89 : vector<24x16xf32>
    %cst_50 = arith.constant dense<0xFF800000> : vector<24xf32>
    %91 = vector.multi_reduction <maximumf>, %90, %cst_50 [1] : vector<24x16xf32> to vector<24xf32>
    %92 = vector.shape_cast %91 : vector<24xf32> to vector<24x1xf32>
    %93 = vector.broadcast %92 : vector<24x1xf32> to vector<24x16xf32>
    %94 = arith.subf %90, %93 : vector<24x16xf32>
    %95 = math.exp %94 : vector<24x16xf32>
    %cst_51 = arith.constant dense<0.000000e+00> : vector<24xf32>
    %96 = vector.multi_reduction <add>, %95, %cst_51 [1] : vector<24x16xf32> to vector<24xf32>
    %97 = vector.shape_cast %96 : vector<24xf32> to vector<24x1xf32>
    %98 = vector.broadcast %97 : vector<24x1xf32> to vector<24x16xf32>
    %99 = arith.divf %95, %98 : vector<24x16xf32>
    %cst_52 = arith.constant dense<0.000000e+00> : vector<24x16xf32>
    %100 = tpu.matmul %99, %87, %cst_52 {dimension_numbers = #tpu.dot_dimension_numbers<[1], [0], [0], [1], [0, 0, 1, 1], [], []>} : vector<24x16xf32>, vector<16x16xf32>, vector<24x16xf32> -> vector<24x16xf32>
    %101 = vector.extract_strided_slice %100 {offsets = [0, 0], sizes = [8, 16], strides = [1, 1]} : vector<24x16xf32> to vector<8x16xf32>
    %c0_53 = arith.constant 0 : index
    %c0_54 = arith.constant 0 : index
    %c16_55 = arith.constant 16 : index
    %102 = vector.load %arg9[%c0_53, %c0_54, %c16_55] : memref<1x8x32xf32, #tpu.memory_space<vmem>>, vector<1x8x16xf32>
    %103 = vector.shape_cast %102 : vector<1x8x16xf32> to vector<8x16xf32>
    %104 = vector.shape_cast %101 : vector<8x16xf32> to vector<1x8x16xf32>
    tpu.vector_store %arg9[%c0_53, %c0_54, %c16_55], %104 {strides = array<i32>} : memref<1x8x32xf32, #tpu.memory_space<vmem>>, vector<1x8x16xf32>,
    %105 = vector.extract_strided_slice %100 {offsets = [8, 0], sizes = [16, 16], strides = [1, 1]} : vector<24x16xf32> to vector<16x16xf32>
    %c0_56 = arith.constant 0 : index
    %c0_57 = arith.constant 0 : index
    %c16_58 = arith.constant 16 : index
    %106 = vector.load %arg8[%c0_56, %c0_57, %c16_58] : memref<1x16x32xf32, #tpu.memory_space<vmem>>, vector<1x16x16xf32>
    %107 = vector.shape_cast %106 : vector<1x16x16xf32> to vector<16x16xf32>
    %108 = vector.shape_cast %105 : vector<16x16xf32> to vector<1x16x16xf32>
    tpu.vector_store %arg8[%c0_56, %c0_57, %c16_58], %108 {strides = array<i32>} : memref<1x16x32xf32, #tpu.memory_space<vmem>>, vector<1x16x16xf32>,
    return
  }
  func.func @transform_0(%arg0: i32) -> (i32, i32, i32) {
    %c0_i32 = arith.constant 0 : i32
    %c0_i32_0 = arith.constant 0 : i32
    %c0_i32_1 = arith.constant 0 : i32
    return %arg0, %c0_i32, %c0_i32_0 : i32, i32, i32
  }
  func.func @transform_1(%arg0: i32) -> (i32, i32, i32) {
    %c0_i32 = arith.constant 0 : i32
    %c0_i32_0 = arith.constant 0 : i32
    %c0_i32_1 = arith.constant 0 : i32
    return %arg0, %c0_i32, %c0_i32_0 : i32, i32, i32
  }
  func.func @transform_2(%arg0: i32) -> (i32, i32, i32) {
    %c0_i32 = arith.constant 0 : i32
    %c0_i32_0 = arith.constant 0 : i32
    %c0_i32_1 = arith.constant 0 : i32
    return %arg0, %c0_i32, %c0_i32_0 : i32, i32, i32
  }
  func.func @transform_3(%arg0: i32) -> (i32, i32, i32) {
    %c0_i32 = arith.constant 0 : i32
    %c0_i32_0 = arith.constant 0 : i32
    %c0_i32_1 = arith.constant 0 : i32
    return %arg0, %c0_i32, %c0_i32_0 : i32, i32, i32
  }
  func.func @transform_4(%arg0: i32) -> (i32, i32, i32) {
    %c0_i32 = arith.constant 0 : i32
    %c0_i32_0 = arith.constant 0 : i32
    %c0_i32_1 = arith.constant 0 : i32
    return %arg0, %c0_i32, %c0_i32_0 : i32, i32, i32
  }
  func.func @transform_5(%arg0: i32) -> (i32, i32, i32) {
    %c0_i32 = arith.constant 0 : i32
    %c0_i32_0 = arith.constant 0 : i32
    %c0_i32_1 = arith.constant 0 : i32
    return %arg0, %c0_i32, %c0_i32_0 : i32, i32, i32
  }
  func.func @transform_6(%arg0: i32) -> (i32, i32, i32) {
    %c0_i32 = arith.constant 0 : i32
    %c0_i32_0 = arith.constant 0 : i32
    %c0_i32_1 = arith.constant 0 : i32
    return %arg0, %c0_i32, %c0_i32_0 : i32, i32, i32
  }
  func.func @transform_7(%arg0: i32) -> (i32, i32, i32) {
    %c0_i32 = arith.constant 0 : i32
    %c0_i32_0 = arith.constant 0 : i32
    %c0_i32_1 = arith.constant 0 : i32
    return %arg0, %c0_i32, %c0_i32_0 : i32, i32, i32
  }
  func.func @transform_8(%arg0: i32) -> (i32, i32, i32) {
    %c0_i32 = arith.constant 0 : i32
    %c0_i32_0 = arith.constant 0 : i32
    %c0_i32_1 = arith.constant 0 : i32
    return %arg0, %c0_i32, %c0_i32_0 : i32, i32, i32
  }
  func.func @transform_9(%arg0: i32) -> (i32, i32, i32) {
    %c0_i32 = arith.constant 0 : i32
    %c0_i32_0 = arith.constant 0 : i32
    %c0_i32_1 = arith.constant 0 : i32
    return %arg0, %c0_i32, %c0_i32_0 : i32, i32, i32
  }
}

</mosaic_0001>

<llo_original>
// kernel: tpu_custom_call.1
$region0: #{tpu_custom_call.1}
  #allocation0 [shape = 'u32[]', space=smem, size = 0x4, offset = 0x4, fixed_abs, tag = 'smem constant byte address 0x4 - core index']
  #allocation1 [shape = 'u32[144,128]{1,0:T(1,128)}', space=vmem, size = 0x12000, scoped, tag = 'internal scratch']
  %s0 = inlined_call_operand.hbm [shape: f32[2,8,32], index: 0, kind: input, shape index: {}]
  %s1 = inlined_call_operand.hbm [shape: f32[2,16,32], index: 1, kind: input, shape index: {}]
  %s2 = inlined_call_operand.hbm [shape: f32[2,8,32], index: 2, kind: input, shape index: {}]
  %s3 = inlined_call_operand.hbm [shape: f32[2,8,32], index: 3, kind: input, shape index: {}]
  %s4 = inlined_call_operand.hbm [shape: f32[2,16,32], index: 4, kind: input, shape index: {}]
  %s5 = inlined_call_operand.hbm [shape: f32[2,16,32], index: 5, kind: input, shape index: {}]
  %s6 = inlined_call_operand.hbm [shape: f32[2,8,32], index: 6, kind: output, shape index: {0}]
  %s7 = inlined_call_operand.hbm [shape: f32[2,16,32], index: 7, kind: output, shape index: {1}]
  %s8 = inlined_call_operand.hbm [shape: f32[2,8,32], index: 8, kind: output, shape index: {2}]
  %s9 = inlined_call_operand.hbm [shape: f32[2,16,32], index: 9, kind: output, shape index: {3}]
  %10 = xla_tuple %s6, %s7, %s8, %s9
  %s11 = sld [smem:[#allocation0]]
  $region105: #{tpu_custom_call.1} parent=0
    _
  %s13 = ssub.s32 1, %s11
  %s14 = scalar_select 0, %s13, %s11
  $region1: #{tpu_custom_call.1} parent=0
    #allocation2 [shape = 'u8[8192]{0}', space=vmem, size = 0x2000, scoped, tag = 'input window, operand 0']
    #allocation3 [shape = 's32[2]{0}', space=sflag, size = 0x8, scoped, tag = 'scoped memory for tpu_custom_call.1']
    #allocation4 [shape = 's32[2]{0}', space=sflag, size = 0x8, scoped, tag = 'scoped memory for tpu_custom_call.1']
    #allocation5 [shape = 'u8[16384]{0}', space=vmem, size = 0x4000, scoped, tag = 'input window, operand 1']
    #allocation6 [shape = 's32[2]{0}', space=sflag, size = 0x8, scoped, tag = 'scoped memory for tpu_custom_call.1']
    #allocation7 [shape = 'u8[8192]{0}', space=vmem, size = 0x2000, scoped, tag = 'input window, operand 2']
    #allocation8 [shape = 'u8[8192]{0}', space=vmem, size = 0x2000, scoped, tag = 'input window, operand 3']
    #allocation9 [shape = 's32[2]{0}', space=sflag, size = 0x8, scoped, tag = 'scoped memory for tpu_custom_call.1']
    #allocation10 [shape = 'u8[16384]{0}', space=vmem, size = 0x4000, scoped, tag = 'input window, operand 4']
    #allocation11 [shape = 'u8[16384]{0}', space=vmem, size = 0x4000, scoped, tag = 'input window, operand 5']
    #allocation12 [shape = 's32[2]{0}', space=sflag, size = 0x8, scoped, tag = 'scoped memory for tpu_custom_call.1']
    #allocation13 [shape = 'u8[8192]{0}', space=vmem, size = 0x2000, scoped, tag = 'output window, operand 0']
    #allocation14 [shape = 'u8[16384]{0}', space=vmem, size = 0x4000, scoped, tag = 'output window, operand 1']
    #allocation15 [shape = 's32[2]{0}', space=sflag, size = 0x8, scoped, tag = 'scoped memory for tpu_custom_call.1']
    #allocation16 [shape = 'u8[8192]{0}', space=vmem, size = 0x2000, scoped, tag = 'output window, operand 2']
    #allocation17 [shape = 'u8[16384]{0}', space=vmem, size = 0x4000, scoped, tag = 'output window, operand 3']
    #allocation18 [shape = 's32[2]{0}', space=sflag, size = 0x8, scoped, tag = 'scoped memory for tpu_custom_call.1']
    %15 = vsyncpa [#allocation3], 0
    %s16 = scalar_lea.sflag [#allocation3], 1
    %17 = vsyncpa %s16, 0
    %18 = vsyncpa [#allocation6], 0
    %s19 = scalar_lea.sflag [#allocation6], 1
    %20 = vsyncpa %s19, 0
    %21 = vsyncpa [#allocation9], 0
    %s22 = scalar_lea.sflag [#allocation9], 1
    %23 = vsyncpa %s22, 0
    %24 = vsyncpa [#allocation12], 0
    %s25 = scalar_lea.sflag [#allocation12], 1
    %26 = vsyncpa %s25, 0
    %27 = vsyncpa [#allocation4], 0
    %s28 = scalar_lea.sflag [#allocation4], 1
    %29 = vsyncpa %s28, 0
    %30 = vsyncpa [#allocation15], 0
    %s31 = scalar_lea.sflag [#allocation15], 1
    %32 = vsyncpa %s31, 0
    %33 = vsyncpa [#allocation18], 0
    %s34 = scalar_lea.sflag [#allocation18], 1
    %35 = vsyncpa %s34, 0
    loop: start=0, step=1, limit=4
    $region2: #{tpu_custom_call.1} parent=1 // loop_pre_header
      _
    $region3: #{tpu_custom_call.1} parent=1 // loop_header
      %s37 = sphi 0, %s41
      %p38 = scmp.ge.s32.totalorder %s37, 4
      %s47 = sphi 0, %s49
      %s50 = sphi 0, %s47
      %s51 = sphi 0, %s50
      %s67 = sphi 0, %s51
      %s73 = sphi 0, %s75
      %s76 = sphi 0, %s73
      %s77 = sphi 0, %s76
      %s93 = sphi 0, %s77
      %s99 = sphi 0, %s101
      %s102 = sphi 0, %s99
      %s103 = sphi 0, %s102
      %s119 = sphi 0, %s103
      %s125 = sphi 0, %s127
      %s128 = sphi 0, %s125
      %s129 = sphi 0, %s128
      %s145 = sphi 0, %s129
      %s151 = sphi 0, %s153
      %s154 = sphi 0, %s151
      %s155 = sphi 0, %s154
      %s171 = sphi 0, %s155
      %s177 = sphi 0, %s179
      %s180 = sphi 0, %s177
      %s181 = sphi 0, %s180
      %s197 = sphi 0, %s181
      %s203 = sphi 0, %s205
      %s206 = sphi 0, %s203
      %s207 = sphi 0, %s206
      %s223 = sphi 0, %s207
      %s229 = sphi 0, %s231
      %s232 = sphi 0, %s229
      %s233 = sphi 0, %s232
      %s249 = sphi 0, %s233
      %s255 = sphi 0, %s257
      %s258 = sphi 0, %s255
      %s259 = sphi 0, %s258
      %s275 = sphi 0, %s259
      %s281 = sphi 0, %s283
      %s284 = sphi 0, %s281
      %s285 = sphi 0, %s284
      %s301 = sphi 0, %s285
    $region4: #{tpu_custom_call.1} parent=1 // loop_header_branch
      %40 = sbr.rel (%p38) target = $region8
    $region5: #{tpu_custom_call.1} parent=1 // loop_body
      %s42 = ssub.s32 %s37, 1
      %s43 = ssub.s32 %s37, 2
      %s44 = sadd.s32 %s37, 1
      %s45 = ssub.s32 %s37, %s44
      %p46 = scmp.eq.s32.totalorder %s45, 0
      %s48 = sadd.s32 %s47, 1
      %s49 = scalar_select %p46, %s47, %s48
      %p52 = pneg %p46
      %p53 = scmp.eq.s32.totalorder %s37, 1
      %p54 = por %p52, %p53
      %p55 = scmp.ne.s32.totalorder %s47, %s50
      %p56 = scmp.eq.s32.totalorder %s37, 0
      %p57 = por %p55, %p56
      %p58 = scmp.ne.s32.totalorder %s47, %s50
      %p59 = scmp.eq.s32.totalorder %s42, 1
      %p60 = por %p58, %p59
      %p61 = scmp.ne.s32.totalorder %s50, %s51
      %p62 = scmp.eq.s32.totalorder %s42, 0
      %p63 = por %p61, %p62
      %p64 = scmp.ne.s32.totalorder %s50, %s51
      %p65 = scmp.eq.s32.totalorder %s43, 1
      %p66 = por %p64, %p65
      %p68 = scmp.ne.s32.totalorder %s51, %s67
      %p69 = scmp.eq.s32.totalorder %s43, 0
      %p70 = por %p68, %p69
      %s71 = ssub.s32 %s37, %s44
      %p72 = scmp.eq.s32.totalorder %s71, 0
      %s74 = sadd.s32 %s73, 1
      %s75 = scalar_select %p72, %s73, %s74
      %p78 = pneg %p72
      %p79 = scmp.eq.s32.totalorder %s37, 1
      %p80 = por %p78, %p79
      %p81 = scmp.ne.s32.totalorder %s73, %s76
      %p82 = scmp.eq.s32.totalorder %s37, 0
      %p83 = por %p81, %p82
      %p84 = scmp.ne.s32.totalorder %s73, %s76
      %p85 = scmp.eq.s32.totalorder %s42, 1
      %p86 = por %p84, %p85
      %p87 = scmp.ne.s32.totalorder %s76, %s77
      %p88 = scmp.eq.s32.totalorder %s42, 0
      %p89 = por %p87, %p88
      %p90 = scmp.ne.s32.totalorder %s76, %s77
      %p91 = scmp.eq.s32.totalorder %s43, 1
      %p92 = por %p90, %p91
      %p94 = scmp.ne.s32.totalorder %s77, %s93
      %p95 = scmp.eq.s32.totalorder %s43, 0
      %p96 = por %p94, %p95
      %s97 = ssub.s32 %s37, %s44
      %p98 = scmp.eq.s32.totalorder %s97, 0
      %s100 = sadd.s32 %s99, 1
      %s101 = scalar_select %p98, %s99, %s100
      %p104 = pneg %p98
      %p105 = scmp.eq.s32.totalorder %s37, 1
      %p106 = por %p104, %p105
      %p107 = scmp.ne.s32.totalorder %s99, %s102
      %p108 = scmp.eq.s32.totalorder %s37, 0
      %p109 = por %p107, %p108
      %p110 = scmp.ne.s32.totalorder %s99, %s102
      %p111 = scmp.eq.s32.totalorder %s42, 1
      %p112 = por %p110, %p111
      %p113 = scmp.ne.s32.totalorder %s102, %s103
      %p114 = scmp.eq.s32.totalorder %s42, 0
      %p115 = por %p113, %p114
      %p116 = scmp.ne.s32.totalorder %s102, %s103
      %p117 = scmp.eq.s32.totalorder %s43, 1
      %p118 = por %p116, %p117
      %p120 = scmp.ne.s32.totalorder %s103, %s119
      %p121 = scmp.eq.s32.totalorder %s43, 0
      %p122 = por %p120, %p121
      %s123 = ssub.s32 %s37, %s44
      %p124 = scmp.eq.s32.totalorder %s123, 0
      %s126 = sadd.s32 %s125, 1
      %s127 = scalar_select %p124, %s125, %s126
      %p130 = pneg %p124
      %p131 = scmp.eq.s32.totalorder %s37, 1
      %p132 = por %p130, %p131
      %p133 = scmp.ne.s32.totalorder %s125, %s128
      %p134 = scmp.eq.s32.totalorder %s37, 0
      %p135 = por %p133, %p134
      %p136 = scmp.ne.s32.totalorder %s125, %s128
      %p137 = scmp.eq.s32.totalorder %s42, 1
      %p138 = por %p136, %p137
      %p139 = scmp.ne.s32.totalorder %s128, %s129
      %p140 = scmp.eq.s32.totalorder %s42, 0
      %p141 = por %p139, %p140
      %p142 = scmp.ne.s32.totalorder %s128, %s129
      %p143 = scmp.eq.s32.totalorder %s43, 1
      %p144 = por %p142, %p143
      %p146 = scmp.ne.s32.totalorder %s129, %s145
      %p147 = scmp.eq.s32.totalorder %s43, 0
      %p148 = por %p146, %p147
      %s149 = ssub.s32 %s37, %s44
      %p150 = scmp.eq.s32.totalorder %s149, 0
      %s152 = sadd.s32 %s151, 1
      %s153 = scalar_select %p150, %s151, %s152
      %p156 = pneg %p150
      %p157 = scmp.eq.s32.totalorder %s37, 1
      %p158 = por %p156, %p157
      %p159 = scmp.ne.s32.totalorder %s151, %s154
      %p160 = scmp.eq.s32.totalorder %s37, 0
      %p161 = por %p159, %p160
      %p162 = scmp.ne.s32.totalorder %s151, %s154
      %p163 = scmp.eq.s32.totalorder %s42, 1
      %p164 = por %p162, %p163
      %p165 = scmp.ne.s32.totalorder %s154, %s155
      %p166 = scmp.eq.s32.totalorder %s42, 0
      %p167 = por %p165, %p166
      %p168 = scmp.ne.s32.totalorder %s154, %s155
      %p169 = scmp.eq.s32.totalorder %s43, 1
      %p170 = por %p168, %p169
      %p172 = scmp.ne.s32.totalorder %s155, %s171
      %p173 = scmp.eq.s32.totalorder %s43, 0
      %p174 = por %p172, %p173
      %s175 = ssub.s32 %s37, %s44
      %p176 = scmp.eq.s32.totalorder %s175, 0
      %s178 = sadd.s32 %s177, 1
      %s179 = scalar_select %p176, %s177, %s178
      %p182 = pneg %p176
      %p183 = scmp.eq.s32.totalorder %s37, 1
      %p184 = por %p182, %p183
      %p185 = scmp.ne.s32.totalorder %s177, %s180
      %p186 = scmp.eq.s32.totalorder %s37, 0
      %p187 = por %p185, %p186
      %p188 = scmp.ne.s32.totalorder %s177, %s180
      %p189 = scmp.eq.s32.totalorder %s42, 1
      %p190 = por %p188, %p189
      %p191 = scmp.ne.s32.totalorder %s180, %s181
      %p192 = scmp.eq.s32.totalorder %s42, 0
      %p193 = por %p191, %p192
      %p194 = scmp.ne.s32.totalorder %s180, %s181
      %p195 = scmp.eq.s32.totalorder %s43, 1
      %p196 = por %p194, %p195
      %p198 = scmp.ne.s32.totalorder %s181, %s197
      %p199 = scmp.eq.s32.totalorder %s43, 0
      %p200 = por %p198, %p199
      %s201 = ssub.s32 %s37, %s44
      %p202 = scmp.eq.s32.totalorder %s201, 0
      %s204 = sadd.s32 %s203, 1
      %s205 = scalar_select %p202, %s203, %s204
      %p208 = pneg %p202
      %p209 = scmp.eq.s32.totalorder %s37, 1
      %p210 = por %p208, %p209
      %p211 = scmp.ne.s32.totalorder %s203, %s206
      %p212 = scmp.eq.s32.totalorder %s37, 0
      %p213 = por %p211, %p212
      %p214 = scmp.ne.s32.totalorder %s203, %s206
      %p215 = scmp.eq.s32.totalorder %s42, 1
      %p216 = por %p214, %p215
      %p217 = scmp.ne.s32.totalorder %s206, %s207
      %p218 = scmp.eq.s32.totalorder %s42, 0
      %p219 = por %p217, %p218
      %p220 = scmp.ne.s32.totalorder %s206, %s207
      %p221 = scmp.eq.s32.totalorder %s43, 1
      %p222 = por %p220, %p221
      %p224 = scmp.ne.s32.totalorder %s207, %s223
      %p225 = scmp.eq.s32.totalorder %s43, 0
      %p226 = por %p224, %p225
      %s227 = ssub.s32 %s37, %s44
      %p228 = scmp.eq.s32.totalorder %s227, 0
      %s230 = sadd.s32 %s229, 1
      %s231 = scalar_select %p228, %s229, %s230
      %p234 = pneg %p228
      %p235 = scmp.eq.s32.totalorder %s37, 1
      %p236 = por %p234, %p235
      %p237 = scmp.ne.s32.totalorder %s229, %s232
      %p238 = scmp.eq.s32.totalorder %s37, 0
      %p239 = por %p237, %p238
      %p240 = scmp.ne.s32.totalorder %s229, %s232
      %p241 = scmp.eq.s32.totalorder %s42, 1
      %p242 = por %p240, %p241
      %p243 = scmp.ne.s32.totalorder %s232, %s233
      %p244 = scmp.eq.s32.totalorder %s42, 0
      %p245 = por %p243, %p244
      %p246 = scmp.ne.s32.totalorder %s232, %s233
      %p247 = scmp.eq.s32.totalorder %s43, 1
      %p248 = por %p246, %p247
      %p250 = scmp.ne.s32.totalorder %s233, %s249
      %p251 = scmp.eq.s32.totalorder %s43, 0
      %p252 = por %p250, %p251
      %s253 = ssub.s32 %s37, %s44
      %p254 = scmp.eq.s32.totalorder %s253, 0
      %s256 = sadd.s32 %s255, 1
      %s257 = scalar_select %p254, %s255, %s256
      %p260 = pneg %p254
      %p261 = scmp.eq.s32.totalorder %s37, 1
      %p262 = por %p260, %p261
      %p263 = scmp.ne.s32.totalorder %s255, %s258
      %p264 = scmp.eq.s32.totalorder %s37, 0
      %p265 = por %p263, %p264
      %p266 = scmp.ne.s32.totalorder %s255, %s258
      %p267 = scmp.eq.s32.totalorder %s42, 1
      %p268 = por %p266, %p267
      %p269 = scmp.ne.s32.totalorder %s258, %s259
      %p270 = scmp.eq.s32.totalorder %s42, 0
      %p271 = por %p269, %p270
      %p272 = scmp.ne.s32.totalorder %s258, %s259
      %p273 = scmp.eq.s32.totalorder %s43, 1
      %p274 = por %p272, %p273
      %p276 = scmp.ne.s32.totalorder %s259, %s275
      %p277 = scmp.eq.s32.totalorder %s43, 0
      %p278 = por %p276, %p277
      %s279 = ssub.s32 %s37, %s44
      %p280 = scmp.eq.s32.totalorder %s279, 0
      %s282 = sadd.s32 %s281, 1
      %s283 = scalar_select %p280, %s281, %s282
      %p286 = pneg %p280
      %p287 = scmp.eq.s32.totalorder %s37, 1
      %p288 = por %p286, %p287
      %p289 = scmp.ne.s32.totalorder %s281, %s284
      %p290 = scmp.eq.s32.totalorder %s37, 0
      %p291 = por %p289, %p290
      %p292 = scmp.ne.s32.totalorder %s281, %s284
      %p293 = scmp.eq.s32.totalorder %s42, 1
      %p294 = por %p292, %p293
      %p295 = scmp.ne.s32.totalorder %s284, %s285
      %p296 = scmp.eq.s32.totalorder %s42, 0
      %p297 = por %p295, %p296
      %p298 = scmp.ne.s32.totalorder %s284, %s285
      %p299 = scmp.eq.s32.totalorder %s43, 1
      %p300 = por %p298, %p299
      %p302 = scmp.ne.s32.totalorder %s285, %s301
      %p303 = scmp.eq.s32.totalorder %s43, 0
      %p304 = por %p302, %p303
      %p305 = scmp.le.s32.totalorder 1, %s37
      %p306 = scmp.lt.s32.totalorder %s37, 3
      %p307 = pnand %p305, %p306
      %p308 = pneg %p307
      // Predicated region
      $region9: #{tpu_custom_call.1} parent=5 // pred_check
        _
      $region10: #{tpu_custom_call.1} parent=5 // pred_check_branch
        %310 = sbr.rel (%p307) target = $region12
      $region11: #{tpu_custom_call.1} parent=5 // pred_region
        %s311 = ssub.s32 %s37, 1
      $region12: #{tpu_custom_call.1} parent=5 // pred_fallthru
        _
      %p312 = scmp.lt.s32.totalorder %s37, 2
      // Predicated region
      $region13: #{tpu_custom_call.1} parent=5 // pred_check
        %p313 = pneg %p312
      $region14: #{tpu_custom_call.1} parent=5 // pred_check_branch
        %315 = sbr.rel (%p313) target = $region16
      $region15: #{tpu_custom_call.1} parent=5 // pred_region
        // Predicated region
        $region17: #{tpu_custom_call.1} parent=15 // pred_check
          %p316 = pneg %p57
        $region18: #{tpu_custom_call.1} parent=15 // pred_check_branch
          %318 = sbr.rel (%p316) target = $region20
        $region19: #{tpu_custom_call.1} parent=15 // pred_region
          %s319 = sand.u32 %s47, 1
          %s320 = scalar_lea.sflag [#allocation3], %s319
          %s321 = sand.u32 %s47, 1
          %s322 = smul.addr %s321, 8
          %s323 = scalar_lea.vmem [#allocation2], %s322
          %s325 = ssub.s32 128, 128
          %326 = vsyncadd %s320, %s325
          %s327 = smul.addr %s37, 128
          %s328 = scalar_lea.hbm %s0, %s327
          %s330 = sshll.u32 %s323, 4
          %s331 = int_to_ptr.vmem [resolvable:$true] %s330
          %333 = dma.hbm_to_vmem [thread:$0]  %s328, 128, %s331, %s320
        $region20: #{tpu_custom_call.1} parent=15 // pred_fallthru
          _
        // Predicated region
        $region21: #{tpu_custom_call.1} parent=15 // pred_check
          %p334 = pneg %p83
        $region22: #{tpu_custom_call.1} parent=15 // pred_check_branch
          %336 = sbr.rel (%p334) target = $region24
        $region23: #{tpu_custom_call.1} parent=15 // pred_region
          %s337 = sand.u32 %s37, 1
          %s338 = scalar_lea.sflag [#allocation6], %s337
          %s339 = sand.u32 %s73, 1
          %s340 = smul.addr %s339, 16
          %s341 = scalar_lea.vmem [#allocation5], %s340
          %s343 = ssub.s32 256, 256
          %344 = vsyncadd %s338, %s343
          %s345 = smul.addr %s37, 2
          %s346 = smul.addr %s345, 128
          %s347 = scalar_lea.hbm %s1, %s346
          %s348 = sshll.u32 %s341, 4
          %s349 = int_to_ptr.vmem [resolvable:$true] %s348
          %354 = dma.hbm_to_vmem [thread:$0]  %s347, 256, %s349, %s338, 128, 128, 8
        $region24: #{tpu_custom_call.1} parent=15 // pred_fallthru
          _
        // Predicated region
        $region25: #{tpu_custom_call.1} parent=15 // pred_check
          %p355 = pneg %p109
        $region26: #{tpu_custom_call.1} parent=15 // pred_check_branch
          %357 = sbr.rel (%p355) target = $region28
        $region27: #{tpu_custom_call.1} parent=15 // pred_region
          %s358 = sand.u32 %s37, 1
          %s359 = scalar_lea.sflag [#allocation6], %s358
          %s360 = sand.u32 %s99, 1
          %s361 = smul.addr %s360, 8
          %s362 = scalar_lea.vmem [#allocation7], %s361
          %s364 = ssub.s32 128, 128
          %365 = vsyncadd %s359, %s364
          %s366 = smul.addr %s37, 128
          %s367 = scalar_lea.hbm %s2, %s366
          %s369 = sshll.u32 %s362, 4
          %s370 = int_to_ptr.vmem [resolvable:$true] %s369
          %372 = dma.hbm_to_vmem [thread:$0]  %s367, 128, %s370, %s359
        $region28: #{tpu_custom_call.1} parent=15 // pred_fallthru
          _
        // Predicated region
        $region29: #{tpu_custom_call.1} parent=15 // pred_check
          %p373 = pneg %p135
        $region30: #{tpu_custom_call.1} parent=15 // pred_check_branch
          %375 = sbr.rel (%p373) target = $region32
        $region31: #{tpu_custom_call.1} parent=15 // pred_region
          %s376 = sand.u32 %s37, 1
          %s377 = scalar_lea.sflag [#allocation9], %s376
          %s378 = sand.u32 %s125, 1
          %s379 = smul.addr %s378, 8
          %s380 = scalar_lea.vmem [#allocation8], %s379
          %s382 = ssub.s32 128, 128
          %383 = vsyncadd %s377, %s382
          %s384 = smul.addr %s37, 128
          %s385 = scalar_lea.hbm %s3, %s384
          %s387 = sshll.u32 %s380, 4
          %s388 = int_to_ptr.vmem [resolvable:$true] %s387
          %390 = dma.hbm_to_vmem [thread:$0]  %s385, 128, %s388, %s377
        $region32: #{tpu_custom_call.1} parent=15 // pred_fallthru
          _
        // Predicated region
        $region33: #{tpu_custom_call.1} parent=15 // pred_check
          %p391 = pneg %p161
        $region34: #{tpu_custom_call.1} parent=15 // pred_check_branch
          %393 = sbr.rel (%p391) target = $region36
        $region35: #{tpu_custom_call.1} parent=15 // pred_region
          %s394 = sand.u32 %s37, 1
          %s395 = scalar_lea.sflag [#allocation9], %s394
          %s396 = sand.u32 %s151, 1
          %s397 = smul.addr %s396, 16
          %s398 = scalar_lea.vmem [#allocation10], %s397
          %s400 = ssub.s32 256, 256
          %401 = vsyncadd %s395, %s400
          %s402 = smul.addr %s37, 2
          %s403 = smul.addr %s402, 128
          %s404 = scalar_lea.hbm %s4, %s403
          %s405 = sshll.u32 %s398, 4
          %s406 = int_to_ptr.vmem [resolvable:$true] %s405
          %411 = dma.hbm_to_vmem [thread:$0]  %s404, 256, %s406, %s395, 128, 128, 8
        $region36: #{tpu_custom_call.1} parent=15 // pred_fallthru
          _
        // Predicated region
        $region37: #{tpu_custom_call.1} parent=15 // pred_check
          %p412 = pneg %p187
        $region38: #{tpu_custom_call.1} parent=15 // pred_check_branch
          %414 = sbr.rel (%p412) target = $region40
        $region39: #{tpu_custom_call.1} parent=15 // pred_region
          %s415 = sand.u32 %s177, 1
          %s416 = scalar_lea.sflag [#allocation12], %s415
          %s417 = sand.u32 %s177, 1
          %s418 = smul.addr %s417, 16
          %s419 = scalar_lea.vmem [#allocation11], %s418
          %s421 = ssub.s32 256, 256
          %422 = vsyncadd %s416, %s421
          %s423 = smul.addr %s37, 2
          %s424 = smul.addr %s423, 128
          %s425 = scalar_lea.hbm %s5, %s424
          %s426 = sshll.u32 %s419, 4
          %s427 = int_to_ptr.vmem [resolvable:$true] %s426
          %432 = dma.hbm_to_vmem [thread:$0]  %s425, 256, %s427, %s416, 128, 128, 8
        $region40: #{tpu_custom_call.1} parent=15 // pred_fallthru
          _
      $region16: #{tpu_custom_call.1} parent=5 // pred_fallthru
        _
      %p433 = scmp.le.s32.totalorder 1, %s37
      %p434 = scmp.lt.s32.totalorder %s37, 3
      %p435 = pnand %p433, %p434
      %p436 = pneg %p435
      // Predicated region
      $region41: #{tpu_custom_call.1} parent=5 // pred_check
        _
      $region42: #{tpu_custom_call.1} parent=5 // pred_check_branch
        %438 = sbr.rel (%p435) target = $region44
      $region43: #{tpu_custom_call.1} parent=5 // pred_region
        %s439 = ssub.s32 %s37, 1
        %s440 = sand.u32 %s50, 1
        %s441 = scalar_lea.sflag [#allocation3], %s440
        %s442 = sand.u32 %s50, 1
        %s443 = smul.addr %s442, 8
        %s444 = scalar_lea.vmem [#allocation2], %s443
        // Predicated region
        $region45: #{tpu_custom_call.1} parent=43 // pred_check
          %p445 = pneg %p63
        $region46: #{tpu_custom_call.1} parent=43 // pred_check_branch
          %447 = sbr.rel (%p445) target = $region48
        $region47: #{tpu_custom_call.1} parent=43 // pred_region
          %448 = dma.done %s441, 128
        $region48: #{tpu_custom_call.1} parent=43 // pred_fallthru
          _
        %s449 = sand.u32 %s42, 1
        %s450 = scalar_lea.sflag [#allocation6], %s449
        %s451 = sand.u32 %s76, 1
        %s452 = smul.addr %s451, 16
        %s453 = scalar_lea.vmem [#allocation5], %s452
        // Predicated region
        $region49: #{tpu_custom_call.1} parent=43 // pred_check
          %p454 = pneg %p89
        $region50: #{tpu_custom_call.1} parent=43 // pred_check_branch
          %456 = sbr.rel (%p454) target = $region52
        $region51: #{tpu_custom_call.1} parent=43 // pred_region
          %457 = dma.done %s450, 256
        $region52: #{tpu_custom_call.1} parent=43 // pred_fallthru
          _
        %s458 = sand.u32 %s42, 1
        %s459 = scalar_lea.sflag [#allocation6], %s458
        %s460 = sand.u32 %s102, 1
        %s461 = smul.addr %s460, 8
        %s462 = scalar_lea.vmem [#allocation7], %s461
        // Predicated region
        $region53: #{tpu_custom_call.1} parent=43 // pred_check
          %p463 = pneg %p115
        $region54: #{tpu_custom_call.1} parent=43 // pred_check_branch
          %465 = sbr.rel (%p463) target = $region56
        $region55: #{tpu_custom_call.1} parent=43 // pred_region
          %466 = dma.done %s459, 128
        $region56: #{tpu_custom_call.1} parent=43 // pred_fallthru
          _
        %s467 = sand.u32 %s42, 1
        %s468 = scalar_lea.sflag [#allocation9], %s467
        %s469 = sand.u32 %s128, 1
        %s470 = smul.addr %s469, 8
        %s471 = scalar_lea.vmem [#allocation8], %s470
        // Predicated region
        $region57: #{tpu_custom_call.1} parent=43 // pred_check
          %p472 = pneg %p141
        $region58: #{tpu_custom_call.1} parent=43 // pred_check_branch
          %474 = sbr.rel (%p472) target = $region60
        $region59: #{tpu_custom_call.1} parent=43 // pred_region
          %475 = dma.done %s468, 128
        $region60: #{tpu_custom_call.1} parent=43 // pred_fallthru
          _
        %s476 = sand.u32 %s42, 1
        %s477 = scalar_lea.sflag [#allocation9], %s476
        %s478 = sand.u32 %s154, 1
        %s479 = smul.addr %s478, 16
        %s480 = scalar_lea.vmem [#allocation10], %s479
        // Predicated region
        $region61: #{tpu_custom_call.1} parent=43 // pred_check
          %p481 = pneg %p167
        $region62: #{tpu_custom_call.1} parent=43 // pred_check_branch
          %483 = sbr.rel (%p481) target = $region64
        $region63: #{tpu_custom_call.1} parent=43 // pred_region
          %484 = dma.done %s477, 256
        $region64: #{tpu_custom_call.1} parent=43 // pred_fallthru
          _
        %s485 = sand.u32 %s180, 1
        %s486 = scalar_lea.sflag [#allocation12], %s485
        %s487 = sand.u32 %s180, 1
        %s488 = smul.addr %s487, 16
        %s489 = scalar_lea.vmem [#allocation11], %s488
        // Predicated region
        $region65: #{tpu_custom_call.1} parent=43 // pred_check
          %p490 = pneg %p193
        $region66: #{tpu_custom_call.1} parent=43 // pred_check_branch
          %492 = sbr.rel (%p490) target = $region68
        $region67: #{tpu_custom_call.1} parent=43 // pred_region
          %493 = dma.done %s486, 256
        $region68: #{tpu_custom_call.1} parent=43 // pred_fallthru
          _
        %s494 = sand.u32 %s50, 1
        %s495 = scalar_lea.sflag [#allocation3], %s494
        %s496 = sand.u32 %s50, 1
        %s497 = smul.addr %s496, 8
        %s498 = scalar_lea.vmem [#allocation2], %s497
        %p499 = pneg %p63
        %p500 = pneg %p60
        %s501 = sand.u32 %s42, 1
        %s502 = scalar_lea.sflag [#allocation6], %s501
        %s503 = sand.u32 %s76, 1
        %s504 = smul.addr %s503, 16
        %s505 = scalar_lea.vmem [#allocation5], %s504
        %p506 = pneg %p89
        %p507 = pneg %p86
        %s508 = sand.u32 %s42, 1
        %s509 = scalar_lea.sflag [#allocation6], %s508
        %s510 = sand.u32 %s102, 1
        %s511 = smul.addr %s510, 8
        %s512 = scalar_lea.vmem [#allocation7], %s511
        %p513 = pneg %p115
        %p514 = pneg %p112
        %s515 = sand.u32 %s42, 1
        %s516 = scalar_lea.sflag [#allocation9], %s515
        %s517 = sand.u32 %s128, 1
        %s518 = smul.addr %s517, 8
        %s519 = scalar_lea.vmem [#allocation8], %s518
        %p520 = pneg %p141
        %p521 = pneg %p138
        %s522 = sand.u32 %s42, 1
        %s523 = scalar_lea.sflag [#allocation9], %s522
        %s524 = sand.u32 %s154, 1
        %s525 = smul.addr %s524, 16
        %s526 = scalar_lea.vmem [#allocation10], %s525
        %p527 = pneg %p167
        %p528 = pneg %p164
        %s529 = sand.u32 %s180, 1
        %s530 = scalar_lea.sflag [#allocation12], %s529
        %s531 = sand.u32 %s180, 1
        %s532 = smul.addr %s531, 16
        %s533 = scalar_lea.vmem [#allocation11], %s532
        %p534 = pneg %p193
        %p535 = pneg %p190
        %p536 = pneg %p219
        %p537 = pneg %p216
        %s538 = sand.u32 %s206, 1
        %s539 = scalar_lea.sflag [#allocation4], %s538
        %s540 = sand.u32 %s206, 1
        %s541 = smul.addr %s540, 8
        %s542 = scalar_lea.vmem [#allocation13], %s541
        %p543 = pneg %p245
        %p544 = pneg %p242
        %s545 = sand.u32 %s42, 1
        %s546 = scalar_lea.sflag [#allocation15], %s545
        %s547 = sand.u32 %s232, 1
        %s548 = smul.addr %s547, 16
        %s549 = scalar_lea.vmem [#allocation14], %s548
        %p550 = pneg %p271
        %p551 = pneg %p268
        %s552 = sand.u32 %s42, 1
        %s553 = scalar_lea.sflag [#allocation15], %s552
        %s554 = sand.u32 %s258, 1
        %s555 = smul.addr %s554, 8
        %s556 = scalar_lea.vmem [#allocation16], %s555
        %p557 = pneg %p297
        %p558 = pneg %p294
        %s559 = sand.u32 %s284, 1
        %s560 = scalar_lea.sflag [#allocation18], %s559
        %s561 = sand.u32 %s284, 1
        %s562 = smul.addr %s561, 16
        %s563 = scalar_lea.vmem [#allocation17], %s562
        %v564 = vld [vmem:[%s444] sm:$0xff]
        %v565 = vld [vmem:[%s453] sm:$0xff]
        %v566 = vld [vmem:[%s453 + $0x8] sm:$0xff]
        %v567 = vld [vmem:[%s462] sm:$0xff]
        %v568 = vld [vmem:[%s471] sm:$0xff]
        %vm569 = vcmask 130048
        %v571 = vsel %vm569, %v564, 0
        %v574 = vsel %vm569, %v565, 0
        %v577 = vsel %vm569, %v566, 0
        %v580 = vsel %vm569, %v567, 0
        %582 = vmatprep.subr.mxu0 0.0
        %583 = vmatpush1.xpose.msra.mxu0 %v580
        %584 = vmatprep.subr.mxu0 0.0
        %585 = vmatpush1.xpose.msra.mxu0 0.0
        %586 = vmatprep.subr.mxu0 0.0
        %587 = vmatpush1.xpose.msra.mxu0 0.0
        %588 = vmatprep.subr.mxu0 0.0
        %589 = vmatpush1.xpose.msra.mxu0 0.0
        %590 = vmatprep.subr.mxu0 0.0
        %591 = vmatpush1.xpose.msra.mxu0 0.0
        %592 = vmatprep.subr.mxu0 0.0
        %593 = vmatpush1.xpose.msra.mxu0 0.0
        %594 = vmatprep.subr.mxu0 0.0
        %595 = vmatpush1.xpose.msra.mxu0 0.0
        %596 = vmatprep.subr.mxu0 0.0
        %597 = vmatpush1.xpose.msra.mxu0 0.0
        %598 = vmatprep.subr.mxu0 0.0
        %599 = vmatpush1.xpose.msra.mxu0 0.0
        %600 = vmatprep.subr.mxu0 0.0
        %601 = vmatpush1.xpose.msra.mxu0 0.0
        %602 = vmatprep.subr.mxu0 0.0
        %603 = vmatpush1.xpose.msra.mxu0 0.0
        %604 = vmatprep.subr.mxu0 0.0
        %605 = vmatpush1.xpose.msra.mxu0 0.0
        %606 = vmatprep.subr.mxu0 0.0
        %607 = vmatpush1.xpose.msra.mxu0 0.0
        %608 = vmatprep.subr.mxu0 0.0
        %609 = vmatpush1.xpose.msra.mxu0 0.0
        %610 = vmatprep.subr.mxu0 0.0
        %611 = vmatpush1.xpose.msra.mxu0 0.0
        %612 = vmatprep.subr.mxu0 0.0
        %613 = vmatpush1.xpose.msra.mxu0 0.0
        %614 = vmatprep.subr.mxu0 0.0
        %615 = vmatpush1.xpose.msra.mxu0 0.0
        %616 = vmatprep.subr.mxu0 0.0
        %617 = vmatpush1.xpose.msra.mxu0 0.0
        %618 = vmatprep.subr.mxu0 0.0
        %619 = vmatpush1.xpose.msra.mxu0 0.0
        %620 = vmatprep.subr.mxu0 0.0
        %621 = vmatpush1.xpose.msra.mxu0 0.0
        %622 = vmatprep.subr.mxu0 0.0
        %623 = vmatpush1.xpose.msra.mxu0 0.0
        %624 = vmatprep.subr.mxu0 0.0
        %625 = vmatpush1.xpose.msra.mxu0 0.0
        %626 = vmatprep.subr.mxu0 0.0
        %627 = vmatpush1.xpose.msra.mxu0 0.0
        %628 = vmatprep.subr.mxu0 0.0
        %629 = vmatpush1.xpose.msra.mxu0 0.0
        %630 = vmatprep.subr.mxu0 0.0
        %631 = vmatpush1.xpose.msra.mxu0 0.0
        %632 = vmatprep.subr.mxu0 0.0
        %633 = vmatpush1.xpose.msra.mxu0 0.0
        %634 = vmatprep.subr.mxu0 0.0
        %635 = vmatpush1.xpose.msra.mxu0 0.0
        %636 = vmatprep.subr.mxu0 0.0
        %637 = vmatpush1.xpose.msra.mxu0 0.0
        %638 = vmatprep.subr.mxu0 0.0
        %639 = vmatpush1.xpose.msra.mxu0 0.0
        %640 = vmatprep.subr.mxu0 0.0
        %641 = vmatpush1.xpose.msra.mxu0 0.0
        %642 = vmatprep.subr.mxu0 0.0
        %643 = vmatpush1.xpose.msra.mxu0 0.0
        %644 = vmatprep.subr.mxu0 0.0
        %645 = vmatpush1.xpose.msra.mxu0 0.0
        %646 = vmatprep.mubr.f32.mxu0 0.0
        %647 = vmatmul.mubr.f32.gmra.mrb[0].mxu0 %v571
        %v648 = vpop.f32.mrb[0].mxu0
        %v649 = vadd.f32 0.0, %v648
        %v650 = vpop.f32.mrb[0].mxu0
        %651 = vmatprep.mubr.f32.mxu0 0.0
        %652 = vmatmul.mubr.f32.gmra.mrb[0].mxu0 %v574
        %v653 = vpop.f32.mrb[0].mxu0
        %v654 = vadd.f32 0.0, %v653
        %v655 = vpop.f32.mrb[0].mxu0
        %656 = vmatprep.mubr.f32.mxu0 0.0
        %657 = vmatmul.mubr.f32.gmra.mrb[0].mxu0 %v577
        %v658 = vpop.f32.mrb[0].mxu0
        %v659 = vadd.f32 0.0, %v658
        %v660 = vpop.f32.mrb[0].mxu0
        %661 = vdwg.mxu0
        %v662 = vmul.f32 %v649, 0.25
        %v663 = vmul.f32 %v654, 0.25
        %v664 = vmul.f32 %v659, 0.25
        %vm665 = vcmask 64512
        %v666 = vsel %vm665, %v662, -inf
        %667 = vmax.xlane.f32.xlu0 %v666
        %v668 = vpop.xlane.xlu0 %667
        %v669 = vsel %vm665, %v663, -inf
        %670 = vmax.xlane.f32.xlu0 %v669
        %v671 = vpop.xlane.xlu0 %670
        %v672 = vsel %vm665, %v664, -inf
        %673 = vmax.xlane.f32.xlu0 %v672
        %v674 = vpop.xlane.xlu0 %673
        %v675 = vsub.f32 %v662, %v668
        %v676 = vsub.f32 %v663, %v671
        %v677 = vsub.f32 %v664, %v674
        %v678 = vmul.f32 %v675, 1.442695
        %v679 = vpow.pop %v678
        %v680 = vmul.f32 %v676, 1.442695
        %v681 = vpow.pop %v680
        %v682 = vmul.f32 %v677, 1.442695
        %v683 = vpow.pop %v682
        %v684 = vsel %vm665, %v679, 0.0
        %685 = vadd.xlane.f32.xlu0 %v684
        %v686 = vpop.xlane.xlu0 %685
        %v687 = vsel %vm665, %v681, 0.0
        %688 = vadd.xlane.f32.xlu0 %v687
        %v689 = vpop.xlane.xlu0 %688
        %v690 = vsel %vm665, %v683, 0.0
        %691 = vadd.xlane.f32.xlu0 %v690
        %v692 = vpop.xlane.xlu0 %691
        %v693 = vrcp.pop %v686
        %v694 = vmul.f32 %v679, %v693
        %v695 = vrcp.pop %v689
        %v696 = vmul.f32 %v681, %v695
        %v697 = vrcp.pop %v692
        %v698 = vmul.f32 %v683, %v697
        %v700 = vsel %vm665, %v694, 0
        %v703 = vsel %vm665, %v696, 0
        %v706 = vsel %vm665, %v698, 0
        %708 = vmatprep.subr.mxu0 0.0
        %709 = vmatpush1.msra.mxu0 %v568
        %710 = vmatprep.subr.mxu0 0.0
        %711 = vmatpush1.msra.mxu0 0.0
        %712 = vmatprep.subr.mxu0 0.0
        %713 = vmatpush1.msra.mxu0 0.0
        %714 = vmatprep.subr.mxu0 0.0
        %715 = vmatpush1.msra.mxu0 0.0
        %716 = vmatprep.subr.mxu0 0.0
        %717 = vmatpush1.msra.mxu0 0.0
        %718 = vmatprep.subr.mxu0 0.0
        %719 = vmatpush1.msra.mxu0 0.0
        %720 = vmatprep.subr.mxu0 0.0
        %721 = vmatpush1.msra.mxu0 0.0
        %722 = vmatprep.subr.mxu0 0.0
        %723 = vmatpush1.msra.mxu0 0.0
        %724 = vmatprep.subr.mxu0 0.0
        %725 = vmatpush1.msra.mxu0 0.0
        %726 = vmatprep.subr.mxu0 0.0
        %727 = vmatpush1.msra.mxu0 0.0
        %728 = vmatprep.subr.mxu0 0.0
        %729 = vmatpush1.msra.mxu0 0.0
        %730 = vmatprep.subr.mxu0 0.0
        %731 = vmatpush1.msra.mxu0 0.0
        %732 = vmatprep.subr.mxu0 0.0
        %733 = vmatpush1.msra.mxu0 0.0
        %734 = vmatprep.subr.mxu0 0.0
        %735 = vmatpush1.msra.mxu0 0.0
        %736 = vmatprep.subr.mxu0 0.0
        %737 = vmatpush1.msra.mxu0 0.0
        %738 = vmatprep.subr.mxu0 0.0
        %739 = vmatpush1.msra.mxu0 0.0
        %740 = vmatprep.subr.mxu0 0.0
        %741 = vmatpush1.msra.mxu0 0.0
        %742 = vmatprep.subr.mxu0 0.0
        %743 = vmatpush1.msra.mxu0 0.0
        %744 = vmatprep.subr.mxu0 0.0
        %745 = vmatpush1.msra.mxu0 0.0
        %746 = vmatprep.subr.mxu0 0.0
        %747 = vmatpush1.msra.mxu0 0.0
        %748 = vmatprep.subr.mxu0 0.0
        %749 = vmatpush1.msra.mxu0 0.0
        %750 = vmatprep.subr.mxu0 0.0
        %751 = vmatpush1.msra.mxu0 0.0
        %752 = vmatprep.subr.mxu0 0.0
        %753 = vmatpush1.msra.mxu0 0.0
        %754 = vmatprep.subr.mxu0 0.0
        %755 = vmatpush1.msra.mxu0 0.0
        %756 = vmatprep.subr.mxu0 0.0
        %757 = vmatpush1.msra.mxu0 0.0
        %758 = vmatprep.subr.mxu0 0.0
        %759 = vmatpush1.msra.mxu0 0.0
        %760 = vmatprep.subr.mxu0 0.0
        %761 = vmatpush1.msra.mxu0 0.0
        %762 = vmatprep.subr.mxu0 0.0
        %763 = vmatpush1.msra.mxu0 0.0
        %764 = vmatprep.subr.mxu0 0.0
        %765 = vmatpush1.msra.mxu0 0.0
        %766 = vmatprep.subr.mxu0 0.0
        %767 = vmatpush1.msra.mxu0 0.0
        %768 = vmatprep.subr.mxu0 0.0
        %769 = vmatpush1.msra.mxu0 0.0
        %770 = vmatprep.subr.mxu0 0.0
        %771 = vmatpush1.msra.mxu0 0.0
        %772 = vmatprep.mubr.f32.mxu0 0.0
        %773 = vmatmul.mubr.f32.gmra.mrb[0].mxu0 %v700
        %v774 = vpop.f32.mrb[0].mxu0
        %v775 = vadd.f32 0.0, %v774
        %v776 = vpop.f32.mrb[0].mxu0
        %777 = vmatprep.mubr.f32.mxu0 0.0
        %778 = vmatmul.mubr.f32.gmra.mrb[0].mxu0 %v703
        %v779 = vpop.f32.mrb[0].mxu0
        %v780 = vadd.f32 0.0, %v779
        %v781 = vpop.f32.mrb[0].mxu0
        %782 = vmatprep.mubr.f32.mxu0 0.0
        %783 = vmatmul.mubr.f32.gmra.mrb[0].mxu0 %v706
        %v784 = vpop.f32.mrb[0].mxu0
        %v785 = vadd.f32 0.0, %v784
        %v786 = vpop.f32.mrb[0].mxu0
        %787 = vdwg.mxu0
        %788 = vst.msk [vmem:[%s542] sm:$0xff] %vm569, %v775
        %789 = vst.msk [vmem:[%s563] sm:$0xff] %vm569, %v780
        %790 = vst.msk [vmem:[%s563 + $0x8] sm:$0xff] %vm569, %v785
        %791 = vrot.lane.b32.xlu0 %v564, 112
        %v792 = vpop.permute.xlu0 %791
        %793 = vrot.lane.b32.xlu0 %v565, 112
        %v794 = vpop.permute.xlu0 %793
        %795 = vrot.lane.b32.xlu0 %v566, 112
        %v796 = vpop.permute.xlu0 %795
        %797 = vrot.lane.b32.xlu0 %v567, 112
        %v798 = vpop.permute.xlu0 %797
        %v799 = vsel %vm569, %v792, 0
        %v801 = vsel %vm569, %v794, 0
        %v803 = vsel %vm569, %v796, 0
        %v805 = vsel %vm569, %v798, 0
        %807 = vmatprep.subr.mxu0 0.0
        %808 = vmatpush1.xpose.msra.mxu0 %v805
        %809 = vmatprep.subr.mxu0 0.0
        %810 = vmatpush1.xpose.msra.mxu0 0.0
        %811 = vmatprep.subr.mxu0 0.0
        %812 = vmatpush1.xpose.msra.mxu0 0.0
        %813 = vmatprep.subr.mxu0 0.0
        %814 = vmatpush1.xpose.msra.mxu0 0.0
        %815 = vmatprep.subr.mxu0 0.0
        %816 = vmatpush1.xpose.msra.mxu0 0.0
        %817 = vmatprep.subr.mxu0 0.0
        %818 = vmatpush1.xpose.msra.mxu0 0.0
        %819 = vmatprep.subr.mxu0 0.0
        %820 = vmatpush1.xpose.msra.mxu0 0.0
        %821 = vmatprep.subr.mxu0 0.0
        %822 = vmatpush1.xpose.msra.mxu0 0.0
        %823 = vmatprep.subr.mxu0 0.0
        %824 = vmatpush1.xpose.msra.mxu0 0.0
        %825 = vmatprep.subr.mxu0 0.0
        %826 = vmatpush1.xpose.msra.mxu0 0.0
        %827 = vmatprep.subr.mxu0 0.0
        %828 = vmatpush1.xpose.msra.mxu0 0.0
        %829 = vmatprep.subr.mxu0 0.0
        %830 = vmatpush1.xpose.msra.mxu0 0.0
        %831 = vmatprep.subr.mxu0 0.0
        %832 = vmatpush1.xpose.msra.mxu0 0.0
        %833 = vmatprep.subr.mxu0 0.0
        %834 = vmatpush1.xpose.msra.mxu0 0.0
        %835 = vmatprep.subr.mxu0 0.0
        %836 = vmatpush1.xpose.msra.mxu0 0.0
        %837 = vmatprep.subr.mxu0 0.0
        %838 = vmatpush1.xpose.msra.mxu0 0.0
        %839 = vmatprep.subr.mxu0 0.0
        %840 = vmatpush1.xpose.msra.mxu0 0.0
        %841 = vmatprep.subr.mxu0 0.0
        %842 = vmatpush1.xpose.msra.mxu0 0.0
        %843 = vmatprep.subr.mxu0 0.0
        %844 = vmatpush1.xpose.msra.mxu0 0.0
        %845 = vmatprep.subr.mxu0 0.0
        %846 = vmatpush1.xpose.msra.mxu0 0.0
        %847 = vmatprep.subr.mxu0 0.0
        %848 = vmatpush1.xpose.msra.mxu0 0.0
        %849 = vmatprep.subr.mxu0 0.0
        %850 = vmatpush1.xpose.msra.mxu0 0.0
        %851 = vmatprep.subr.mxu0 0.0
        %852 = vmatpush1.xpose.msra.mxu0 0.0
        %853 = vmatprep.subr.mxu0 0.0
        %854 = vmatpush1.xpose.msra.mxu0 0.0
        %855 = vmatprep.subr.mxu0 0.0
        %856 = vmatpush1.xpose.msra.mxu0 0.0
        %857 = vmatprep.subr.mxu0 0.0
        %858 = vmatpush1.xpose.msra.mxu0 0.0
        %859 = vmatprep.subr.mxu0 0.0
        %860 = vmatpush1.xpose.msra.mxu0 0.0
        %861 = vmatprep.subr.mxu0 0.0
        %862 = vmatpush1.xpose.msra.mxu0 0.0
        %863 = vmatprep.subr.mxu0 0.0
        %864 = vmatpush1.xpose.msra.mxu0 0.0
        %865 = vmatprep.subr.mxu0 0.0
        %866 = vmatpush1.xpose.msra.mxu0 0.0
        %867 = vmatprep.subr.mxu0 0.0
        %868 = vmatpush1.xpose.msra.mxu0 0.0
        %869 = vmatprep.subr.mxu0 0.0
        %870 = vmatpush1.xpose.msra.mxu0 0.0
        %871 = vmatprep.mubr.f32.mxu0 0.0
        %872 = vmatmul.mubr.f32.gmra.mrb[0].mxu0 %v799
        %v873 = vpop.f32.mrb[0].mxu0
        %v874 = vadd.f32 0.0, %v873
        %v875 = vpop.f32.mrb[0].mxu0
        %876 = vmatprep.mubr.f32.mxu0 0.0
        %877 = vmatmul.mubr.f32.gmra.mrb[0].mxu0 %v801
        %v878 = vpop.f32.mrb[0].mxu0
        %v879 = vadd.f32 0.0, %v878
        %v880 = vpop.f32.mrb[0].mxu0
        %881 = vmatprep.mubr.f32.mxu0 0.0
        %882 = vmatmul.mubr.f32.gmra.mrb[0].mxu0 %v803
        %v883 = vpop.f32.mrb[0].mxu0
        %v884 = vadd.f32 0.0, %v883
        %v885 = vpop.f32.mrb[0].mxu0
        %886 = vdwg.mxu0
        %v887 = vmul.f32 %v874, 0.25
        %v888 = vmul.f32 %v879, 0.25
        %v889 = vmul.f32 %v884, 0.25
        %v890 = vsel %vm665, %v887, -inf
        %891 = vmax.xlane.f32.xlu0 %v890
        %v892 = vpop.xlane.xlu0 %891
        %v893 = vsel %vm665, %v888, -inf
        %894 = vmax.xlane.f32.xlu0 %v893
        %v895 = vpop.xlane.xlu0 %894
        %v896 = vsel %vm665, %v889, -inf
        %897 = vmax.xlane.f32.xlu0 %v896
        %v898 = vpop.xlane.xlu0 %897
        %v899 = vsub.f32 %v887, %v892
        %v900 = vsub.f32 %v888, %v895
        %v901 = vsub.f32 %v889, %v898
        %v902 = vmul.f32 %v899, 1.442695
        %v903 = vpow.pop %v902
        %v904 = vmul.f32 %v900, 1.442695
        %v905 = vpow.pop %v904
        %v906 = vmul.f32 %v901, 1.442695
        %v907 = vpow.pop %v906
        %v908 = vsel %vm665, %v903, 0.0
        %909 = vadd.xlane.f32.xlu0 %v908
        %v910 = vpop.xlane.xlu0 %909
        %v911 = vsel %vm665, %v905, 0.0
        %912 = vadd.xlane.f32.xlu0 %v911
        %v913 = vpop.xlane.xlu0 %912
        %v914 = vsel %vm665, %v907, 0.0
        %915 = vadd.xlane.f32.xlu0 %v914
        %v916 = vpop.xlane.xlu0 %915
        %v917 = vrcp.pop %v910
        %v918 = vmul.f32 %v903, %v917
        %v919 = vrcp.pop %v913
        %v920 = vmul.f32 %v905, %v919
        %v921 = vrcp.pop %v916
        %v922 = vmul.f32 %v907, %v921
        %924 = vrot.lane.b32.xlu0 %v568, 112
        %v925 = vpop.permute.xlu0 %924
        %v928 = vsel %vm665, %v918, 0
        %v931 = vsel %vm665, %v920, 0
        %v934 = vsel %vm665, %v922, 0
        %936 = vmatprep.subr.mxu0 0.0
        %937 = vmatpush1.msra.mxu0 %v925
        %938 = vmatprep.subr.mxu0 0.0
        %939 = vmatpush1.msra.mxu0 0.0
        %940 = vmatprep.subr.mxu0 0.0
        %941 = vmatpush1.msra.mxu0 0.0
        %942 = vmatprep.subr.mxu0 0.0
        %943 = vmatpush1.msra.mxu0 0.0
        %944 = vmatprep.subr.mxu0 0.0
        %945 = vmatpush1.msra.mxu0 0.0
        %946 = vmatprep.subr.mxu0 0.0
        %947 = vmatpush1.msra.mxu0 0.0
        %948 = vmatprep.subr.mxu0 0.0
        %949 = vmatpush1.msra.mxu0 0.0
        %950 = vmatprep.subr.mxu0 0.0
        %951 = vmatpush1.msra.mxu0 0.0
        %952 = vmatprep.subr.mxu0 0.0
        %953 = vmatpush1.msra.mxu0 0.0
        %954 = vmatprep.subr.mxu0 0.0
        %955 = vmatpush1.msra.mxu0 0.0
        %956 = vmatprep.subr.mxu0 0.0
        %957 = vmatpush1.msra.mxu0 0.0
        %958 = vmatprep.subr.mxu0 0.0
        %959 = vmatpush1.msra.mxu0 0.0
        %960 = vmatprep.subr.mxu0 0.0
        %961 = vmatpush1.msra.mxu0 0.0
        %962 = vmatprep.subr.mxu0 0.0
        %963 = vmatpush1.msra.mxu0 0.0
        %964 = vmatprep.subr.mxu0 0.0
        %965 = vmatpush1.msra.mxu0 0.0
        %966 = vmatprep.subr.mxu0 0.0
        %967 = vmatpush1.msra.mxu0 0.0
        %968 = vmatprep.subr.mxu0 0.0
        %969 = vmatpush1.msra.mxu0 0.0
        %970 = vmatprep.subr.mxu0 0.0
        %971 = vmatpush1.msra.mxu0 0.0
        %972 = vmatprep.subr.mxu0 0.0
        %973 = vmatpush1.msra.mxu0 0.0
        %974 = vmatprep.subr.mxu0 0.0
        %975 = vmatpush1.msra.mxu0 0.0
        %976 = vmatprep.subr.mxu0 0.0
        %977 = vmatpush1.msra.mxu0 0.0
        %978 = vmatprep.subr.mxu0 0.0
        %979 = vmatpush1.msra.mxu0 0.0
        %980 = vmatprep.subr.mxu0 0.0
        %981 = vmatpush1.msra.mxu0 0.0
        %982 = vmatprep.subr.mxu0 0.0
        %983 = vmatpush1.msra.mxu0 0.0
        %984 = vmatprep.subr.mxu0 0.0
        %985 = vmatpush1.msra.mxu0 0.0
        %986 = vmatprep.subr.mxu0 0.0
        %987 = vmatpush1.msra.mxu0 0.0
        %988 = vmatprep.subr.mxu0 0.0
        %989 = vmatpush1.msra.mxu0 0.0
        %990 = vmatprep.subr.mxu0 0.0
        %991 = vmatpush1.msra.mxu0 0.0
        %992 = vmatprep.subr.mxu0 0.0
        %993 = vmatpush1.msra.mxu0 0.0
        %994 = vmatprep.subr.mxu0 0.0
        %995 = vmatpush1.msra.mxu0 0.0
        %996 = vmatprep.subr.mxu0 0.0
        %997 = vmatpush1.msra.mxu0 0.0
        %998 = vmatprep.subr.mxu0 0.0
        %999 = vmatpush1.msra.mxu0 0.0
        %1000 = vmatprep.mubr.f32.mxu0 0.0
        %1001 = vmatmul.mubr.f32.gmra.mrb[0].mxu0 %v928
        %v1002 = vpop.f32.mrb[0].mxu0
        %v1003 = vadd.f32 0.0, %v1002
        %v1004 = vpop.f32.mrb[0].mxu0
        %1005 = vmatprep.mubr.f32.mxu0 0.0
        %1006 = vmatmul.mubr.f32.gmra.mrb[0].mxu0 %v931
        %v1007 = vpop.f32.mrb[0].mxu0
        %v1008 = vadd.f32 0.0, %v1007
        %v1009 = vpop.f32.mrb[0].mxu0
        %1010 = vmatprep.mubr.f32.mxu0 0.0
        %1011 = vmatmul.mubr.f32.gmra.mrb[0].mxu0 %v934
        %v1012 = vpop.f32.mrb[0].mxu0
        %v1013 = vadd.f32 0.0, %v1012
        %v1014 = vpop.f32.mrb[0].mxu0
        %1015 = vdwg.mxu0
        %1017 = vrot.lane.b32.xlu0 %v1003, 16
        %v1018 = vpop.permute.xlu0 %1017
        %vm1020 = vcmask 261248
        %1021 = vst.msk [vmem:[%s542] sm:$0xff] %vm1020, %v1018
        %1024 = vrot.lane.b32.xlu0 %v1008, 16
        %v1025 = vpop.permute.xlu0 %1024
        %1026 = vrot.lane.b32.xlu0 %v1013, 16
        %v1027 = vpop.permute.xlu0 %1026
        %1030 = vst.msk [vmem:[%s563] sm:$0xff] %vm1020, %v1025
        %1031 = vst.msk [vmem:[%s563 + $0x8] sm:$0xff] %vm1020, %v1027
        %v1032 = vld [vmem:[%s480] sm:$0xff]
        %v1033 = vld [vmem:[%s480 + $0x8] sm:$0xff]
        %v1034 = vld [vmem:[%s489] sm:$0xff]
        %v1035 = vld [vmem:[%s489 + $0x8] sm:$0xff]
        %v1037 = vsel %vm569, %v1032, 0
        %v1040 = vsel %vm569, %v1033, 0
        %1042 = vmatprep.subr.mxu0 0.0
        %1043 = vmatpush1.xpose.msra.mxu0 %v1037
        %1044 = vmatprep.subr.mxu0 0.0
        %1045 = vmatpush1.xpose.msra.mxu0 %v1040
        %1046 = vmatprep.subr.mxu0 0.0
        %1047 = vmatpush1.xpose.msra.mxu0 0.0
        %1048 = vmatprep.subr.mxu0 0.0
        %1049 = vmatpush1.xpose.msra.mxu0 0.0
        %1050 = vmatprep.subr.mxu0 0.0
        %1051 = vmatpush1.xpose.msra.mxu0 0.0
        %1052 = vmatprep.subr.mxu0 0.0
        %1053 = vmatpush1.xpose.msra.mxu0 0.0
        %1054 = vmatprep.subr.mxu0 0.0
        %1055 = vmatpush1.xpose.msra.mxu0 0.0
        %1056 = vmatprep.subr.mxu0 0.0
        %1057 = vmatpush1.xpose.msra.mxu0 0.0
        %1058 = vmatprep.subr.mxu0 0.0
        %1059 = vmatpush1.xpose.msra.mxu0 0.0
        %1060 = vmatprep.subr.mxu0 0.0
        %1061 = vmatpush1.xpose.msra.mxu0 0.0
        %1062 = vmatprep.subr.mxu0 0.0
        %1063 = vmatpush1.xpose.msra.mxu0 0.0
        %1064 = vmatprep.subr.mxu0 0.0
        %1065 = vmatpush1.xpose.msra.mxu0 0.0
        %1066 = vmatprep.subr.mxu0 0.0
        %1067 = vmatpush1.xpose.msra.mxu0 0.0
        %1068 = vmatprep.subr.mxu0 0.0
        %1069 = vmatpush1.xpose.msra.mxu0 0.0
        %1070 = vmatprep.subr.mxu0 0.0
        %1071 = vmatpush1.xpose.msra.mxu0 0.0
        %1072 = vmatprep.subr.mxu0 0.0
        %1073 = vmatpush1.xpose.msra.mxu0 0.0
        %1074 = vmatprep.subr.mxu0 0.0
        %1075 = vmatpush1.xpose.msra.mxu0 0.0
        %1076 = vmatprep.subr.mxu0 0.0
        %1077 = vmatpush1.xpose.msra.mxu0 0.0
        %1078 = vmatprep.subr.mxu0 0.0
        %1079 = vmatpush1.xpose.msra.mxu0 0.0
        %1080 = vmatprep.subr.mxu0 0.0
        %1081 = vmatpush1.xpose.msra.mxu0 0.0
        %1082 = vmatprep.subr.mxu0 0.0
        %1083 = vmatpush1.xpose.msra.mxu0 0.0
        %1084 = vmatprep.subr.mxu0 0.0
        %1085 = vmatpush1.xpose.msra.mxu0 0.0
        %1086 = vmatprep.subr.mxu0 0.0
        %1087 = vmatpush1.xpose.msra.mxu0 0.0
        %1088 = vmatprep.subr.mxu0 0.0
        %1089 = vmatpush1.xpose.msra.mxu0 0.0
        %1090 = vmatprep.subr.mxu0 0.0
        %1091 = vmatpush1.xpose.msra.mxu0 0.0
        %1092 = vmatprep.subr.mxu0 0.0
        %1093 = vmatpush1.xpose.msra.mxu0 0.0
        %1094 = vmatprep.subr.mxu0 0.0
        %1095 = vmatpush1.xpose.msra.mxu0 0.0
        %1096 = vmatprep.subr.mxu0 0.0
        %1097 = vmatpush1.xpose.msra.mxu0 0.0
        %1098 = vmatprep.subr.mxu0 0.0
        %1099 = vmatpush1.xpose.msra.mxu0 0.0
        %1100 = vmatprep.subr.mxu0 0.0
        %1101 = vmatpush1.xpose.msra.mxu0 0.0
        %1102 = vmatprep.subr.mxu0 0.0
        %1103 = vmatpush1.xpose.msra.mxu0 0.0
        %1104 = vmatprep.subr.mxu0 0.0
        %1105 = vmatpush1.xpose.msra.mxu0 0.0
        %1106 = vmatprep.mubr.f32.mxu0 0.0
        %1107 = vmatmul.mubr.f32.gmra.mrb[0].mxu0 %v571
        %v1108 = vpop.f32.mrb[0].mxu0
        %v1109 = vadd.f32 0.0, %v1108
        %v1110 = vpop.f32.mrb[0].mxu0
        %1111 = vmatprep.mubr.f32.mxu0 0.0
        %1112 = vmatmul.mubr.f32.gmra.mrb[0].mxu0 %v574
        %v1113 = vpop.f32.mrb[0].mxu0
        %v1114 = vadd.f32 0.0, %v1113
        %v1115 = vpop.f32.mrb[0].mxu0
        %1116 = vmatprep.mubr.f32.mxu0 0.0
        %1117 = vmatmul.mubr.f32.gmra.mrb[0].mxu0 %v577
        %v1118 = vpop.f32.mrb[0].mxu0
        %v1119 = vadd.f32 0.0, %v1118
        %v1120 = vpop.f32.mrb[0].mxu0
        %1121 = vdwg.mxu0
        %v1122 = vmul.f32 %v1109, 0.25
        %v1123 = vmul.f32 %v1114, 0.25
        %v1124 = vmul.f32 %v1119, 0.25
        %v1125 = vsel %vm569, %v1122, -inf
        %1126 = vmax.xlane.f32.xlu0 %v1125
        %v1127 = vpop.xlane.xlu0 %1126
        %v1128 = vsel %vm569, %v1123, -inf
        %1129 = vmax.xlane.f32.xlu0 %v1128
        %v1130 = vpop.xlane.xlu0 %1129
        %v1131 = vsel %vm569, %v1124, -inf
        %1132 = vmax.xlane.f32.xlu0 %v1131
        %v1133 = vpop.xlane.xlu0 %1132
        %v1134 = vsub.f32 %v1122, %v1127
        %v1135 = vsub.f32 %v1123, %v1130
        %v1136 = vsub.f32 %v1124, %v1133
        %v1137 = vmul.f32 %v1134, 1.442695
        %v1138 = vpow.pop %v1137
        %v1139 = vmul.f32 %v1135, 1.442695
        %v1140 = vpow.pop %v1139
        %v1141 = vmul.f32 %v1136, 1.442695
        %v1142 = vpow.pop %v1141
        %v1143 = vsel %vm569, %v1138, 0.0
        %1144 = vadd.xlane.f32.xlu0 %v1143
        %v1145 = vpop.xlane.xlu0 %1144
        %v1146 = vsel %vm569, %v1140, 0.0
        %1147 = vadd.xlane.f32.xlu0 %v1146
        %v1148 = vpop.xlane.xlu0 %1147
        %v1149 = vsel %vm569, %v1142, 0.0
        %1150 = vadd.xlane.f32.xlu0 %v1149
        %v1151 = vpop.xlane.xlu0 %1150
        %v1152 = vrcp.pop %v1145
        %v1153 = vmul.f32 %v1138, %v1152
        %v1154 = vrcp.pop %v1148
        %v1155 = vmul.f32 %v1140, %v1154
        %v1156 = vrcp.pop %v1151
        %v1157 = vmul.f32 %v1142, %v1156
        %v1159 = vsel %vm569, %v1153, 0
        %v1162 = vsel %vm569, %v1155, 0
        %v1165 = vsel %vm569, %v1157, 0
        %1167 = vmatprep.subr.mxu0 0.0
        %1168 = vmatpush1.msra.mxu0 %v1034
        %1169 = vmatprep.subr.mxu0 0.0
        %1170 = vmatpush1.msra.mxu0 %v1035
        %1171 = vmatprep.subr.mxu0 0.0
        %1172 = vmatpush1.msra.mxu0 0.0
        %1173 = vmatprep.subr.mxu0 0.0
        %1174 = vmatpush1.msra.mxu0 0.0
        %1175 = vmatprep.subr.mxu0 0.0
        %1176 = vmatpush1.msra.mxu0 0.0
        %1177 = vmatprep.subr.mxu0 0.0
        %1178 = vmatpush1.msra.mxu0 0.0
        %1179 = vmatprep.subr.mxu0 0.0
        %1180 = vmatpush1.msra.mxu0 0.0
        %1181 = vmatprep.subr.mxu0 0.0
        %1182 = vmatpush1.msra.mxu0 0.0
        %1183 = vmatprep.subr.mxu0 0.0
        %1184 = vmatpush1.msra.mxu0 0.0
        %1185 = vmatprep.subr.mxu0 0.0
        %1186 = vmatpush1.msra.mxu0 0.0
        %1187 = vmatprep.subr.mxu0 0.0
        %1188 = vmatpush1.msra.mxu0 0.0
        %1189 = vmatprep.subr.mxu0 0.0
        %1190 = vmatpush1.msra.mxu0 0.0
        %1191 = vmatprep.subr.mxu0 0.0
        %1192 = vmatpush1.msra.mxu0 0.0
        %1193 = vmatprep.subr.mxu0 0.0
        %1194 = vmatpush1.msra.mxu0 0.0
        %1195 = vmatprep.subr.mxu0 0.0
        %1196 = vmatpush1.msra.mxu0 0.0
        %1197 = vmatprep.subr.mxu0 0.0
        %1198 = vmatpush1.msra.mxu0 0.0
        %1199 = vmatprep.subr.mxu0 0.0
        %1200 = vmatpush1.msra.mxu0 0.0
        %1201 = vmatprep.subr.mxu0 0.0
        %1202 = vmatpush1.msra.mxu0 0.0
        %1203 = vmatprep.subr.mxu0 0.0
        %1204 = vmatpush1.msra.mxu0 0.0
        %1205 = vmatprep.subr.mxu0 0.0
        %1206 = vmatpush1.msra.mxu0 0.0
        %1207 = vmatprep.subr.mxu0 0.0
        %1208 = vmatpush1.msra.mxu0 0.0
        %1209 = vmatprep.subr.mxu0 0.0
        %1210 = vmatpush1.msra.mxu0 0.0
        %1211 = vmatprep.subr.mxu0 0.0
        %1212 = vmatpush1.msra.mxu0 0.0
        %1213 = vmatprep.subr.mxu0 0.0
        %1214 = vmatpush1.msra.mxu0 0.0
        %1215 = vmatprep.subr.mxu0 0.0
        %1216 = vmatpush1.msra.mxu0 0.0
        %1217 = vmatprep.subr.mxu0 0.0
        %1218 = vmatpush1.msra.mxu0 0.0
        %1219 = vmatprep.subr.mxu0 0.0
        %1220 = vmatpush1.msra.mxu0 0.0
        %1221 = vmatprep.subr.mxu0 0.0
        %1222 = vmatpush1.msra.mxu0 0.0
        %1223 = vmatprep.subr.mxu0 0.0
        %1224 = vmatpush1.msra.mxu0 0.0
        %1225 = vmatprep.subr.mxu0 0.0
        %1226 = vmatpush1.msra.mxu0 0.0
        %1227 = vmatprep.subr.mxu0 0.0
        %1228 = vmatpush1.msra.mxu0 0.0
        %1229 = vmatprep.subr.mxu0 0.0
        %1230 = vmatpush1.msra.mxu0 0.0
        %1231 = vmatprep.mubr.f32.mxu0 0.0
        %1232 = vmatmul.mubr.f32.gmra.mrb[0].mxu0 %v1159
        %v1233 = vpop.f32.mrb[0].mxu0
        %v1234 = vadd.f32 0.0, %v1233
        %v1235 = vpop.f32.mrb[0].mxu0
        %1236 = vmatprep.mubr.f32.mxu0 0.0
        %1237 = vmatmul.mubr.f32.gmra.mrb[0].mxu0 %v1162
        %v1238 = vpop.f32.mrb[0].mxu0
        %v1239 = vadd.f32 0.0, %v1238
        %v1240 = vpop.f32.mrb[0].mxu0
        %1241 = vmatprep.mubr.f32.mxu0 0.0
        %1242 = vmatmul.mubr.f32.gmra.mrb[0].mxu0 %v1165
        %v1243 = vpop.f32.mrb[0].mxu0
        %v1244 = vadd.f32 0.0, %v1243
        %v1245 = vpop.f32.mrb[0].mxu0
        %1246 = vdwg.mxu0
        %1247 = vst.msk [vmem:[%s556] sm:$0xff] %vm569, %v1234
        %1248 = vst.msk [vmem:[%s549] sm:$0xff] %vm569, %v1239
        %1249 = vst.msk [vmem:[%s549 + $0x8] sm:$0xff] %vm569, %v1244
        %1250 = vrot.lane.b32.xlu0 %v1032, 112
        %v1251 = vpop.permute.xlu0 %1250
        %1252 = vrot.lane.b32.xlu0 %v1033, 112
        %v1253 = vpop.permute.xlu0 %1252
        %v1254 = vsel %vm569, %v1251, 0
        %v1256 = vsel %vm569, %v1253, 0
        %1258 = vmatprep.subr.mxu0 0.0
        %1259 = vmatpush1.xpose.msra.mxu0 %v1254
        %1260 = vmatprep.subr.mxu0 0.0
        %1261 = vmatpush1.xpose.msra.mxu0 %v1256
        %1262 = vmatprep.subr.mxu0 0.0
        %1263 = vmatpush1.xpose.msra.mxu0 0.0
        %1264 = vmatprep.subr.mxu0 0.0
        %1265 = vmatpush1.xpose.msra.mxu0 0.0
        %1266 = vmatprep.subr.mxu0 0.0
        %1267 = vmatpush1.xpose.msra.mxu0 0.0
        %1268 = vmatprep.subr.mxu0 0.0
        %1269 = vmatpush1.xpose.msra.mxu0 0.0
        %1270 = vmatprep.subr.mxu0 0.0
        %1271 = vmatpush1.xpose.msra.mxu0 0.0
        %1272 = vmatprep.subr.mxu0 0.0
        %1273 = vmatpush1.xpose.msra.mxu0 0.0
        %1274 = vmatprep.subr.mxu0 0.0
        %1275 = vmatpush1.xpose.msra.mxu0 0.0
        %1276 = vmatprep.subr.mxu0 0.0
        %1277 = vmatpush1.xpose.msra.mxu0 0.0
        %1278 = vmatprep.subr.mxu0 0.0
        %1279 = vmatpush1.xpose.msra.mxu0 0.0
        %1280 = vmatprep.subr.mxu0 0.0
        %1281 = vmatpush1.xpose.msra.mxu0 0.0
        %1282 = vmatprep.subr.mxu0 0.0
        %1283 = vmatpush1.xpose.msra.mxu0 0.0
        %1284 = vmatprep.subr.mxu0 0.0
        %1285 = vmatpush1.xpose.msra.mxu0 0.0
        %1286 = vmatprep.subr.mxu0 0.0
        %1287 = vmatpush1.xpose.msra.mxu0 0.0
        %1288 = vmatprep.subr.mxu0 0.0
        %1289 = vmatpush1.xpose.msra.mxu0 0.0
        %1290 = vmatprep.subr.mxu0 0.0
        %1291 = vmatpush1.xpose.msra.mxu0 0.0
        %1292 = vmatprep.subr.mxu0 0.0
        %1293 = vmatpush1.xpose.msra.mxu0 0.0
        %1294 = vmatprep.subr.mxu0 0.0
        %1295 = vmatpush1.xpose.msra.mxu0 0.0
        %1296 = vmatprep.subr.mxu0 0.0
        %1297 = vmatpush1.xpose.msra.mxu0 0.0
        %1298 = vmatprep.subr.mxu0 0.0
        %1299 = vmatpush1.xpose.msra.mxu0 0.0
        %1300 = vmatprep.subr.mxu0 0.0
        %1301 = vmatpush1.xpose.msra.mxu0 0.0
        %1302 = vmatprep.subr.mxu0 0.0
        %1303 = vmatpush1.xpose.msra.mxu0 0.0
        %1304 = vmatprep.subr.mxu0 0.0
        %1305 = vmatpush1.xpose.msra.mxu0 0.0
        %1306 = vmatprep.subr.mxu0 0.0
        %1307 = vmatpush1.xpose.msra.mxu0 0.0
        %1308 = vmatprep.subr.mxu0 0.0
        %1309 = vmatpush1.xpose.msra.mxu0 0.0
        %1310 = vmatprep.subr.mxu0 0.0
        %1311 = vmatpush1.xpose.msra.mxu0 0.0
        %1312 = vmatprep.subr.mxu0 0.0
        %1313 = vmatpush1.xpose.msra.mxu0 0.0
        %1314 = vmatprep.subr.mxu0 0.0
        %1315 = vmatpush1.xpose.msra.mxu0 0.0
        %1316 = vmatprep.subr.mxu0 0.0
        %1317 = vmatpush1.xpose.msra.mxu0 0.0
        %1318 = vmatprep.subr.mxu0 0.0
        %1319 = vmatpush1.xpose.msra.mxu0 0.0
        %1320 = vmatprep.subr.mxu0 0.0
        %1321 = vmatpush1.xpose.msra.mxu0 0.0
        %1322 = vmatprep.mubr.f32.mxu0 0.0
        %1323 = vmatmul.mubr.f32.gmra.mrb[0].mxu0 %v799
        %v1324 = vpop.f32.mrb[0].mxu0
        %v1325 = vadd.f32 0.0, %v1324
        %v1326 = vpop.f32.mrb[0].mxu0
        %1327 = vmatprep.mubr.f32.mxu0 0.0
        %1328 = vmatmul.mubr.f32.gmra.mrb[0].mxu0 %v801
        %v1329 = vpop.f32.mrb[0].mxu0
        %v1330 = vadd.f32 0.0, %v1329
        %v1331 = vpop.f32.mrb[0].mxu0
        %1332 = vmatprep.mubr.f32.mxu0 0.0
        %1333 = vmatmul.mubr.f32.gmra.mrb[0].mxu0 %v803
        %v1334 = vpop.f32.mrb[0].mxu0
        %v1335 = vadd.f32 0.0, %v1334
        %v1336 = vpop.f32.mrb[0].mxu0
        %1337 = vdwg.mxu0
        %v1338 = vmul.f32 %v1325, 0.25
        %v1339 = vmul.f32 %v1330, 0.25
        %v1340 = vmul.f32 %v1335, 0.25
        %v1341 = vsel %vm569, %v1338, -inf
        %1342 = vmax.xlane.f32.xlu0 %v1341
        %v1343 = vpop.xlane.xlu0 %1342
        %v1344 = vsel %vm569, %v1339, -inf
        %1345 = vmax.xlane.f32.xlu0 %v1344
        %v1346 = vpop.xlane.xlu0 %1345
        %v1347 = vsel %vm569, %v1340, -inf
        %1348 = vmax.xlane.f32.xlu0 %v1347
        %v1349 = vpop.xlane.xlu0 %1348
        %v1350 = vsub.f32 %v1338, %v1343
        %v1351 = vsub.f32 %v1339, %v1346
        %v1352 = vsub.f32 %v1340, %v1349
        %v1353 = vmul.f32 %v1350, 1.442695
        %v1354 = vpow.pop %v1353
        %v1355 = vmul.f32 %v1351, 1.442695
        %v1356 = vpow.pop %v1355
        %v1357 = vmul.f32 %v1352, 1.442695
        %v1358 = vpow.pop %v1357
        %v1359 = vsel %vm569, %v1354, 0.0
        %1360 = vadd.xlane.f32.xlu0 %v1359
        %v1361 = vpop.xlane.xlu0 %1360
        %v1362 = vsel %vm569, %v1356, 0.0
        %1363 = vadd.xlane.f32.xlu0 %v1362
        %v1364 = vpop.xlane.xlu0 %1363
        %v1365 = vsel %vm569, %v1358, 0.0
        %1366 = vadd.xlane.f32.xlu0 %v1365
        %v1367 = vpop.xlane.xlu0 %1366
        %v1368 = vrcp.pop %v1361
        %v1369 = vmul.f32 %v1354, %v1368
        %v1370 = vrcp.pop %v1364
        %v1371 = vmul.f32 %v1356, %v1370
        %v1372 = vrcp.pop %v1367
        %v1373 = vmul.f32 %v1358, %v1372
        %1376 = vrot.lane.b32.xlu0 %v1034, 112
        %v1377 = vpop.permute.xlu0 %1376
        %1378 = vrot.lane.b32.xlu0 %v1035, 112
        %v1379 = vpop.permute.xlu0 %1378
        %v1383 = vsel %vm569, %v1369, 0
        %v1386 = vsel %vm569, %v1371, 0
        %v1389 = vsel %vm569, %v1373, 0
        %1391 = vmatprep.subr.mxu0 0.0
        %1392 = vmatpush1.msra.mxu0 %v1377
        %1393 = vmatprep.subr.mxu0 0.0
        %1394 = vmatpush1.msra.mxu0 %v1379
        %1395 = vmatprep.subr.mxu0 0.0
        %1396 = vmatpush1.msra.mxu0 0.0
        %1397 = vmatprep.subr.mxu0 0.0
        %1398 = vmatpush1.msra.mxu0 0.0
        %1399 = vmatprep.subr.mxu0 0.0
        %1400 = vmatpush1.msra.mxu0 0.0
        %1401 = vmatprep.subr.mxu0 0.0
        %1402 = vmatpush1.msra.mxu0 0.0
        %1403 = vmatprep.subr.mxu0 0.0
        %1404 = vmatpush1.msra.mxu0 0.0
        %1405 = vmatprep.subr.mxu0 0.0
        %1406 = vmatpush1.msra.mxu0 0.0
        %1407 = vmatprep.subr.mxu0 0.0
        %1408 = vmatpush1.msra.mxu0 0.0
        %1409 = vmatprep.subr.mxu0 0.0
        %1410 = vmatpush1.msra.mxu0 0.0
        %1411 = vmatprep.subr.mxu0 0.0
        %1412 = vmatpush1.msra.mxu0 0.0
        %1413 = vmatprep.subr.mxu0 0.0
        %1414 = vmatpush1.msra.mxu0 0.0
        %1415 = vmatprep.subr.mxu0 0.0
        %1416 = vmatpush1.msra.mxu0 0.0
        %1417 = vmatprep.subr.mxu0 0.0
        %1418 = vmatpush1.msra.mxu0 0.0
        %1419 = vmatprep.subr.mxu0 0.0
        %1420 = vmatpush1.msra.mxu0 0.0
        %1421 = vmatprep.subr.mxu0 0.0
        %1422 = vmatpush1.msra.mxu0 0.0
        %1423 = vmatprep.subr.mxu0 0.0
        %1424 = vmatpush1.msra.mxu0 0.0
        %1425 = vmatprep.subr.mxu0 0.0
        %1426 = vmatpush1.msra.mxu0 0.0
        %1427 = vmatprep.subr.mxu0 0.0
        %1428 = vmatpush1.msra.mxu0 0.0
        %1429 = vmatprep.subr.mxu0 0.0
        %1430 = vmatpush1.msra.mxu0 0.0
        %1431 = vmatprep.subr.mxu0 0.0
        %1432 = vmatpush1.msra.mxu0 0.0
        %1433 = vmatprep.subr.mxu0 0.0
        %1434 = vmatpush1.msra.mxu0 0.0
        %1435 = vmatprep.subr.mxu0 0.0
        %1436 = vmatpush1.msra.mxu0 0.0
        %1437 = vmatprep.subr.mxu0 0.0
        %1438 = vmatpush1.msra.mxu0 0.0
        %1439 = vmatprep.subr.mxu0 0.0
        %1440 = vmatpush1.msra.mxu0 0.0
        %1441 = vmatprep.subr.mxu0 0.0
        %1442 = vmatpush1.msra.mxu0 0.0
        %1443 = vmatprep.subr.mxu0 0.0
        %1444 = vmatpush1.msra.mxu0 0.0
        %1445 = vmatprep.subr.mxu0 0.0
        %1446 = vmatpush1.msra.mxu0 0.0
        %1447 = vmatprep.subr.mxu0 0.0
        %1448 = vmatpush1.msra.mxu0 0.0
        %1449 = vmatprep.subr.mxu0 0.0
        %1450 = vmatpush1.msra.mxu0 0.0
        %1451 = vmatprep.subr.mxu0 0.0
        %1452 = vmatpush1.msra.mxu0 0.0
        %1453 = vmatprep.subr.mxu0 0.0
        %1454 = vmatpush1.msra.mxu0 0.0
        %1455 = vmatprep.mubr.f32.mxu0 0.0
        %1456 = vmatmul.mubr.f32.gmra.mrb[0].mxu0 %v1383
        %v1457 = vpop.f32.mrb[0].mxu0
        %v1458 = vadd.f32 0.0, %v1457
        %v1459 = vpop.f32.mrb[0].mxu0
        %1460 = vmatprep.mubr.f32.mxu0 0.0
        %1461 = vmatmul.mubr.f32.gmra.mrb[0].mxu0 %v1386
        %v1462 = vpop.f32.mrb[0].mxu0
        %v1463 = vadd.f32 0.0, %v1462
        %v1464 = vpop.f32.mrb[0].mxu0
        %1465 = vmatprep.mubr.f32.mxu0 0.0
        %1466 = vmatmul.mubr.f32.gmra.mrb[0].mxu0 %v1389
        %v1467 = vpop.f32.mrb[0].mxu0
        %v1468 = vadd.f32 0.0, %v1467
        %v1469 = vpop.f32.mrb[0].mxu0
        %1470 = vdwg.mxu0
        %1472 = vrot.lane.b32.xlu0 %v1458, 16
        %v1473 = vpop.permute.xlu0 %1472
        %1475 = vst.msk [vmem:[%s556] sm:$0xff] %vm1020, %v1473
        %1478 = vrot.lane.b32.xlu0 %v1463, 16
        %v1479 = vpop.permute.xlu0 %1478
        %1480 = vrot.lane.b32.xlu0 %v1468, 16
        %v1481 = vpop.permute.xlu0 %1480
        %1484 = vst.msk [vmem:[%s549] sm:$0xff] %vm1020, %v1479
        %1485 = vst.msk [vmem:[%s549 + $0x8] sm:$0xff] %vm1020, %v1481
        %s1486 = sand.u32 %s206, 1
        %s1487 = scalar_lea.sflag [#allocation4], %s1486
        %s1488 = sand.u32 %s206, 1
        %s1489 = smul.addr %s1488, 8
        %s1490 = scalar_lea.vmem [#allocation13], %s1489
        %s1491 = sand.u32 %s42, 1
        %s1492 = scalar_lea.sflag [#allocation15], %s1491
        %s1493 = sand.u32 %s232, 1
        %s1494 = smul.addr %s1493, 16
        %s1495 = scalar_lea.vmem [#allocation14], %s1494
        %s1496 = sand.u32 %s42, 1
        %s1497 = scalar_lea.sflag [#allocation15], %s1496
        %s1498 = sand.u32 %s258, 1
        %s1499 = smul.addr %s1498, 8
        %s1500 = scalar_lea.vmem [#allocation16], %s1499
        %s1501 = sand.u32 %s284, 1
        %s1502 = scalar_lea.sflag [#allocation18], %s1501
        %s1503 = sand.u32 %s284, 1
        %s1504 = smul.addr %s1503, 16
        %s1505 = scalar_lea.vmem [#allocation17], %s1504
        // Predicated region
        $region69: #{tpu_custom_call.1} parent=43 // pred_check
          %p1506 = pneg %p216
        $region70: #{tpu_custom_call.1} parent=43 // pred_check_branch
          %1508 = sbr.rel (%p1506) target = $region72
        $region71: #{tpu_custom_call.1} parent=43 // pred_region
          %s1510 = ssub.s32 128, 128
          %1511 = vsyncadd %s1487, %s1510
          %s1512 = smul.addr %s42, 128
          %s1513 = scalar_lea.hbm %s6, %s1512
          %s1515 = sshll.u32 %s1490, 4
          %s1516 = int_to_ptr.vmem [resolvable:$true] %s1515
          %1518 = dma.vmem_to_hbm [thread:$0]  %s1516, 128, %s1513, %s1487
        $region72: #{tpu_custom_call.1} parent=43 // pred_fallthru
          _
        // Predicated region
        $region73: #{tpu_custom_call.1} parent=43 // pred_check
          %p1519 = pneg %p242
        $region74: #{tpu_custom_call.1} parent=43 // pred_check_branch
          %1521 = sbr.rel (%p1519) target = $region76
        $region75: #{tpu_custom_call.1} parent=43 // pred_region
          %s1523 = ssub.s32 256, 256
          %1524 = vsyncadd %s1492, %s1523
          %s1525 = smul.addr %s42, 2
          %s1526 = smul.addr %s1525, 128
          %s1527 = scalar_lea.hbm %s7, %s1526
          %s1528 = sshll.u32 %s1495, 4
          %s1529 = int_to_ptr.vmem [resolvable:$true] %s1528
          %1534 = dma.vmem_to_hbm [thread:$0]  %s1529, 256, %s1527, %s1492, 128, 128, 8
        $region76: #{tpu_custom_call.1} parent=43 // pred_fallthru
          _
        // Predicated region
        $region77: #{tpu_custom_call.1} parent=43 // pred_check
          %p1535 = pneg %p268
        $region78: #{tpu_custom_call.1} parent=43 // pred_check_branch
          %1537 = sbr.rel (%p1535) target = $region80
        $region79: #{tpu_custom_call.1} parent=43 // pred_region
          %s1539 = ssub.s32 128, 128
          %1540 = vsyncadd %s1497, %s1539
          %s1541 = smul.addr %s42, 128
          %s1542 = scalar_lea.hbm %s8, %s1541
          %s1544 = sshll.u32 %s1500, 4
          %s1545 = int_to_ptr.vmem [resolvable:$true] %s1544
          %1547 = dma.vmem_to_hbm [thread:$0]  %s1545, 128, %s1542, %s1497
        $region80: #{tpu_custom_call.1} parent=43 // pred_fallthru
          _
        // Predicated region
        $region81: #{tpu_custom_call.1} parent=43 // pred_check
          %p1548 = pneg %p294
        $region82: #{tpu_custom_call.1} parent=43 // pred_check_branch
          %1550 = sbr.rel (%p1548) target = $region84
        $region83: #{tpu_custom_call.1} parent=43 // pred_region
          %s1552 = ssub.s32 256, 256
          %1553 = vsyncadd %s1502, %s1552
          %s1554 = smul.addr %s42, 2
          %s1555 = smul.addr %s1554, 128
          %s1556 = scalar_lea.hbm %s9, %s1555
          %s1557 = sshll.u32 %s1505, 4
          %s1558 = int_to_ptr.vmem [resolvable:$true] %s1557
          %1563 = dma.vmem_to_hbm [thread:$0]  %s1558, 256, %s1556, %s1502, 128, 128, 8
        $region84: #{tpu_custom_call.1} parent=43 // pred_fallthru
          _
      $region44: #{tpu_custom_call.1} parent=5 // pred_fallthru
        _
      %p1564 = scmp.le.s32.totalorder 2, %s37
      // Predicated region
      $region85: #{tpu_custom_call.1} parent=5 // pred_check
        %p1565 = pneg %p1564
      $region86: #{tpu_custom_call.1} parent=5 // pred_check_branch
        %1567 = sbr.rel (%p1565) target = $region88
      $region87: #{tpu_custom_call.1} parent=5 // pred_region
        %s1568 = ssub.s32 %s37, 2
        // Predicated region
        $region89: #{tpu_custom_call.1} parent=87 // pred_check
          %p1569 = pneg %p222
        $region90: #{tpu_custom_call.1} parent=87 // pred_check_branch
          %1571 = sbr.rel (%p1569) target = $region92
        $region91: #{tpu_custom_call.1} parent=87 // pred_region
          %s1572 = sand.u32 %s207, 1
          %s1573 = scalar_lea.sflag [#allocation4], %s1572
          %s1574 = sand.u32 %s207, 1
          %s1575 = smul.addr %s1574, 8
          %s1576 = scalar_lea.vmem [#allocation13], %s1575
          %1577 = dma.done %s1573, 128
        $region92: #{tpu_custom_call.1} parent=87 // pred_fallthru
          _
        // Predicated region
        $region93: #{tpu_custom_call.1} parent=87 // pred_check
          %p1578 = pneg %p248
        $region94: #{tpu_custom_call.1} parent=87 // pred_check_branch
          %1580 = sbr.rel (%p1578) target = $region96
        $region95: #{tpu_custom_call.1} parent=87 // pred_region
          %s1581 = sand.u32 %s43, 1
          %s1582 = scalar_lea.sflag [#allocation15], %s1581
          %s1583 = sand.u32 %s233, 1
          %s1584 = smul.addr %s1583, 16
          %s1585 = scalar_lea.vmem [#allocation14], %s1584
          %1586 = dma.done %s1582, 256
        $region96: #{tpu_custom_call.1} parent=87 // pred_fallthru
          _
        // Predicated region
        $region97: #{tpu_custom_call.1} parent=87 // pred_check
          %p1587 = pneg %p274
        $region98: #{tpu_custom_call.1} parent=87 // pred_check_branch
          %1589 = sbr.rel (%p1587) target = $region100
        $region99: #{tpu_custom_call.1} parent=87 // pred_region
          %s1590 = sand.u32 %s43, 1
          %s1591 = scalar_lea.sflag [#allocation15], %s1590
          %s1592 = sand.u32 %s259, 1
          %s1593 = smul.addr %s1592, 8
          %s1594 = scalar_lea.vmem [#allocation16], %s1593
          %1595 = dma.done %s1591, 128
        $region100: #{tpu_custom_call.1} parent=87 // pred_fallthru
          _
        // Predicated region
        $region101: #{tpu_custom_call.1} parent=87 // pred_check
          %p1596 = pneg %p300
        $region102: #{tpu_custom_call.1} parent=87 // pred_check_branch
          %1598 = sbr.rel (%p1596) target = $region104
        $region103: #{tpu_custom_call.1} parent=87 // pred_region
          %s1599 = sand.u32 %s285, 1
          %s1600 = scalar_lea.sflag [#allocation18], %s1599
          %s1601 = sand.u32 %s285, 1
          %s1602 = smul.addr %s1601, 16
          %s1603 = scalar_lea.vmem [#allocation17], %s1602
          %1604 = dma.done %s1600, 256
        $region104: #{tpu_custom_call.1} parent=87 // pred_fallthru
          _
      $region88: #{tpu_custom_call.1} parent=5 // pred_fallthru
        _
    $region6: #{tpu_custom_call.1} parent=1 // loop_footer
      %s41 = sadd.s32 1, %s37
    $region7: #{tpu_custom_call.1} parent=1 // loop_footer_branch
      %36 = sbr.rel target = $region3
    $region8: #{tpu_custom_call.1} parent=1 // loop_exit
      _
    %1605 = vsyncpa [#allocation3], 1
    %s1606 = scalar_lea.sflag [#allocation3], 1
    %1607 = vsyncpa %s1606, 1
    %1608 = vsyncpa [#allocation6], 1
    %s1609 = scalar_lea.sflag [#allocation6], 1
    %1610 = vsyncpa %s1609, 1
    %1611 = vsyncpa [#allocation9], 1
    %s1612 = scalar_lea.sflag [#allocation9], 1
    %1613 = vsyncpa %s1612, 1
    %1614 = vsyncpa [#allocation12], 1
    %s1615 = scalar_lea.sflag [#allocation12], 1
    %1616 = vsyncpa %s1615, 1
    %1617 = vsyncpa [#allocation4], 1
    %s1618 = scalar_lea.sflag [#allocation4], 1
    %1619 = vsyncpa %s1618, 1
    %1620 = vsyncpa [#allocation15], 1
    %s1621 = scalar_lea.sflag [#allocation15], 1
    %1622 = vsyncpa %s1621, 1
    %1623 = vsyncpa [#allocation18], 1
    %s1624 = scalar_lea.sflag [#allocation18], 1
    %1625 = vsyncpa %s1624, 1

</llo_original>
